<compile_context>
chip_gen: v5e
topology: v5e:2x2
jax: 0.10.0
libtpu: 0.0.40
codegen_flags: <defaults>
</compile_context>

<pallas_src>
import functools

import jax
import jax.numpy as jnp
from jax import lax
from jax.experimental import pallas as pl
from jax.experimental.pallas import tpu as pltpu


def _conv_bn_relu_kernel(x_ref, w_ref, scale_ref, bias_ref, o_ref, *,
                         kernel_size, stride, dilation, h_out, w_out):
    # x_ref    : (1, H_pad, W_pad, C_in)  one spatially pre-padded image (NHWC)
    # w_ref    : (K*K, C_in, C_out)       one (C_in, C_out) weight slab per tap
    # scale_ref: (1, C_out)               folded BN scale  gamma/sqrt(var+eps)
    # bias_ref : (1, C_out)               folded BN + conv bias
    # o_ref    : (1, H_out, W_out, C_out)
    x = x_ref[0]                                         # (H_pad, W_pad, C_in)
    c_in = x_ref.shape[-1]
    c_out = o_ref.shape[-1]

    h_span = (h_out - 1) * stride + 1
    w_span = (w_out - 1) * stride + 1

    acc = jnp.zeros((h_out * w_out, c_out), jnp.float32)
    for kh in range(kernel_size):                        # static unroll: K*K taps
        for kw in range(kernel_size):
            patch = x[kh * dilation:kh * dilation + h_span,
                      kw * dilation:kw * dilation + w_span, :]
            if stride > 1:
                patch = patch[::stride, ::stride, :]
            lhs = patch.reshape(h_out * w_out, c_in)
            w_tap = w_ref[kh * kernel_size + kw]         # (C_in, C_out)
            acc = acc + jnp.dot(lhs, w_tap,              # MXU, f32 accumulate
                                preferred_element_type=jnp.float32)

    y = acc * scale_ref[...] + bias_ref[...]             # fused BN(eval) + bias
    y = jnp.maximum(y, 0.0)                              # ReLU
    o_ref[...] = y.reshape(1, h_out, w_out, c_out).astype(o_ref.dtype)


def basic_conv_layer(x, weight, conv_bias, gamma, beta, running_mean,
                     running_var, *, stride=1, dilation=1, groups=1, eps=1e-5):
    """Fused Conv2d(bias) + BatchNorm2d(eval) + ReLU, NCHW in / NCHW out."""
    # TODO(synk): grouped convolution (groups > 1) is not implemented here.
    assert groups == 1, "grouped convolution not supported by this kernel"

    n, c_in, h, w = x.shape
    c_out, c_in_w, k, k2 = weight.shape
    assert k == k2 and c_in_w == c_in

    pad = ((k - 1) // 2) * dilation
    h_out = (h + 2 * pad - dilation * (k - 1) - 1) // stride + 1
    w_out = (w + 2 * pad - dilation * (k - 1) - 1) // stride + 1
    h_pad, w_pad = h + 2 * pad, w + 2 * pad

    # NHWC, spatially pre-padded (channels on the lane axis inside the kernel).
    x_nhwc = jnp.transpose(x, (0, 2, 3, 1)).astype(jnp.float32)
    x_p = jnp.pad(x_nhwc, ((0, 0), (pad, pad), (pad, pad), (0, 0)))

    # (C_out, C_in, K, K) -> (K*K, C_in, C_out): one MXU-ready slab per tap.
    w_t = jnp.transpose(weight, (2, 3, 1, 0)).reshape(k * k, c_in, c_out)
    w_t = w_t.astype(jnp.float32)

    # Fold eval-mode BatchNorm and the conv bias into per-channel scale/bias:
    #   bn(conv(x) + b) = conv(x) * s + ((b - mean) * s + beta),
    #   with s = gamma / sqrt(var + eps).
    scale = gamma / jnp.sqrt(running_var + eps)
    bias = (conv_bias - running_mean) * scale + beta
    scale = scale.reshape(1, c_out).astype(jnp.float32)
    bias = bias.reshape(1, c_out).astype(jnp.float32)

    kernel = functools.partial(
        _conv_bn_relu_kernel, kernel_size=k, stride=stride, dilation=dilation,
        h_out=h_out, w_out=w_out)

    out = pl.pallas_call(
        kernel,
        out_shape=jax.ShapeDtypeStruct((n, h_out, w_out, c_out), jnp.float32),
        grid_spec=pltpu.PrefetchScalarGridSpec(
            num_scalar_prefetch=0,
            grid=(n,),
            in_specs=[
                pl.BlockSpec((1, h_pad, w_pad, c_in), lambda i: (i, 0, 0, 0)),
                pl.BlockSpec((k * k, c_in, c_out), lambda i: (0, 0, 0)),
                pl.BlockSpec((1, c_out), lambda i: (0, 0)),
                pl.BlockSpec((1, c_out), lambda i: (0, 0)),
            ],
            out_specs=pl.BlockSpec((1, h_out, w_out, c_out),
                                   lambda i: (i, 0, 0, 0)),
        ),
        compiler_params=pltpu.CompilerParams(
            dimension_semantics=("parallel",)),
    )(x_p, w_t, scale, bias)

    return jnp.transpose(out, (0, 3, 1, 2))              # back to NCHW


def _reference(x, weight, conv_bias, gamma, beta, running_mean, running_var,
               *, stride=1, dilation=1, groups=1, eps=1e-5):
    # Pure-JAX reference mirroring Basic_conv_layer.forward (BN in eval mode).
    k = weight.shape[-1]
    pad = ((k - 1) // 2) * dilation
    y = lax.conv_general_dilated(
        x.astype(jnp.float32), weight.astype(jnp.float32),
        window_strides=(stride, stride),
        padding=[(pad, pad), (pad, pad)],
        rhs_dilation=(dilation, dilation),
        dimension_numbers=("NCHW", "OIHW", "NCHW"),
        feature_group_count=groups)
    y = y + conv_bias[None, :, None, None]
    inv = gamma / jnp.sqrt(running_var + eps)
    y = (y - running_mean[None, :, None, None]) * inv[None, :, None, None] \
        + beta[None, :, None, None]
    return jnp.maximum(y, 0.0)


if __name__ == "__main__":
    key = jax.random.PRNGKey(0)
    kx, kw, kb, kg, kbe, km, kv = jax.random.split(key, 7)

    n, c_in, hh, ww = 2, 32, 16, 16
    c_out, ksz = 128, 3          # C_out multiple of 128 -> lane-dense stores

    x = jax.random.normal(kx, (n, c_in, hh, ww), jnp.float32)
    weight = jax.random.normal(kw, (c_out, c_in, ksz, ksz), jnp.float32) * 0.1
    conv_bias = jax.random.normal(kb, (c_out,), jnp.float32) * 0.1
    gamma = jax.random.uniform(kg, (c_out,), jnp.float32, 0.5, 1.5)
    beta = jax.random.normal(kbe, (c_out,), jnp.float32) * 0.1
    running_mean = jax.random.normal(km, (c_out,), jnp.float32) * 0.1
    running_var = jax.random.uniform(kv, (c_out,), jnp.float32, 0.5, 1.5)

    out = jax.block_until_ready(
        basic_conv_layer(x, weight, conv_bias, gamma, beta,
                         running_mean, running_var,
                         stride=1, dilation=1, groups=1))
    ref = jax.block_until_ready(
        _reference(x, weight, conv_bias, gamma, beta,
                   running_mean, running_var,
                   stride=1, dilation=1, groups=1))

    assert out.shape == (n, c_out, hh, ww), out.shape
    assert out.dtype == jnp.float32
    assert jnp.allclose(out, ref, rtol=1e-4, atol=1e-4), \
        float(jnp.max(jnp.abs(out - ref)))
    print("KERNEL_OK")
</pallas_src>

<mosaic_0001>
module attributes {stable_mosaic.version = 11 : i64} {
  func.func @_conv_bn_relu_kernel(%arg0: i32, %arg1: memref<1x18x18x32xf32, #tpu.memory_space<vmem>>, %arg2: memref<9x32x128xf32, #tpu.memory_space<vmem>>, %arg3: memref<1x128xf32, #tpu.memory_space<vmem>>, %arg4: memref<1x128xf32, #tpu.memory_space<vmem>>, %arg5: memref<1x16x16x128xf32, #tpu.memory_space<vmem>>) attributes {dimension_semantics = [#tpu.dimension_semantics<parallel>], iteration_bounds = array<i64: 2>, scalar_prefetch = 0 : i64, scratch_operands = 0 : i64, tpu.core_type = #tpu.core_type<tc>, window_params = [{transform_indices = @transform_0, window_bounds = array<i64: 1, 18, 18, 32>}, {pipeline_mode = #tpu.pipeline_mode<synchronous>, transform_indices = @transform_1, window_bounds = array<i64: 9, 32, 128>}, {pipeline_mode = #tpu.pipeline_mode<synchronous>, transform_indices = @transform_2, window_bounds = array<i64: 1, 128>}, {pipeline_mode = #tpu.pipeline_mode<synchronous>, transform_indices = @transform_3, window_bounds = array<i64: 1, 128>}, {transform_indices = @transform_4, window_bounds = array<i64: 1, 16, 16, 128>}]} {
    %c0 = arith.constant 0 : index
    %c0_0 = arith.constant 0 : index
    %c0_1 = arith.constant 0 : index
    %c0_2 = arith.constant 0 : index
    %0 = vector.load %arg1[%c0, %c0_0, %c0_1, %c0_2] : memref<1x18x18x32xf32, #tpu.memory_space<vmem>>, vector<1x18x18x32xf32>
    %1 = vector.shape_cast %0 : vector<1x18x18x32xf32> to vector<18x18x32xf32>
    %cst = arith.constant 0.000000e+00 : f32
    %2 = vector.broadcast %cst : f32 to vector<256x128xf32>
    %3 = vector.extract_strided_slice %1 {offsets = [0, 0, 0], sizes = [16, 16, 32], strides = [1, 1, 1]} : vector<18x18x32xf32> to vector<16x16x32xf32>
    %4 = vector.shape_cast %3 : vector<16x16x32xf32> to vector<256x32xf32>
    %c0_3 = arith.constant 0 : index
    %c0_4 = arith.constant 0 : index
    %c0_5 = arith.constant 0 : index
    %5 = vector.load %arg2[%c0_3, %c0_4, %c0_5] : memref<9x32x128xf32, #tpu.memory_space<vmem>>, vector<1x32x128xf32>
    %6 = vector.shape_cast %5 : vector<1x32x128xf32> to vector<32x128xf32>
    %cst_6 = arith.constant dense<0.000000e+00> : vector<256x128xf32>
    %7 = tpu.matmul %4, %6, %cst_6 {dimension_numbers = #tpu.dot_dimension_numbers<[1], [0], [0], [1], [0, 0, 1, 1], [], []>} : vector<256x32xf32>, vector<32x128xf32>, vector<256x128xf32> -> vector<256x128xf32>
    %8 = arith.addf %2, %7 : vector<256x128xf32>
    %9 = vector.extract_strided_slice %1 {offsets = [0, 1, 0], sizes = [16, 16, 32], strides = [1, 1, 1]} : vector<18x18x32xf32> to vector<16x16x32xf32>
    %10 = vector.shape_cast %9 : vector<16x16x32xf32> to vector<256x32xf32>
    %c1 = arith.constant 1 : index
    %c0_7 = arith.constant 0 : index
    %c0_8 = arith.constant 0 : index
    %11 = vector.load %arg2[%c1, %c0_7, %c0_8] : memref<9x32x128xf32, #tpu.memory_space<vmem>>, vector<1x32x128xf32>
    %12 = vector.shape_cast %11 : vector<1x32x128xf32> to vector<32x128xf32>
    %cst_9 = arith.constant dense<0.000000e+00> : vector<256x128xf32>
    %13 = tpu.matmul %10, %12, %cst_9 {dimension_numbers = #tpu.dot_dimension_numbers<[1], [0], [0], [1], [0, 0, 1, 1], [], []>} : vector<256x32xf32>, vector<32x128xf32>, vector<256x128xf32> -> vector<256x128xf32>
    %14 = arith.addf %8, %13 : vector<256x128xf32>
    %15 = vector.extract_strided_slice %1 {offsets = [0, 2, 0], sizes = [16, 16, 32], strides = [1, 1, 1]} : vector<18x18x32xf32> to vector<16x16x32xf32>
    %16 = vector.shape_cast %15 : vector<16x16x32xf32> to vector<256x32xf32>
    %c2 = arith.constant 2 : index
    %c0_10 = arith.constant 0 : index
    %c0_11 = arith.constant 0 : index
    %17 = vector.load %arg2[%c2, %c0_10, %c0_11] : memref<9x32x128xf32, #tpu.memory_space<vmem>>, vector<1x32x128xf32>
    %18 = vector.shape_cast %17 : vector<1x32x128xf32> to vector<32x128xf32>
    %cst_12 = arith.constant dense<0.000000e+00> : vector<256x128xf32>
    %19 = tpu.matmul %16, %18, %cst_12 {dimension_numbers = #tpu.dot_dimension_numbers<[1], [0], [0], [1], [0, 0, 1, 1], [], []>} : vector<256x32xf32>, vector<32x128xf32>, vector<256x128xf32> -> vector<256x128xf32>
    %20 = arith.addf %14, %19 : vector<256x128xf32>
    %21 = vector.extract_strided_slice %1 {offsets = [1, 0, 0], sizes = [16, 16, 32], strides = [1, 1, 1]} : vector<18x18x32xf32> to vector<16x16x32xf32>
    %22 = vector.shape_cast %21 : vector<16x16x32xf32> to vector<256x32xf32>
    %c3 = arith.constant 3 : index
    %c0_13 = arith.constant 0 : index
    %c0_14 = arith.constant 0 : index
    %23 = vector.load %arg2[%c3, %c0_13, %c0_14] : memref<9x32x128xf32, #tpu.memory_space<vmem>>, vector<1x32x128xf32>
    %24 = vector.shape_cast %23 : vector<1x32x128xf32> to vector<32x128xf32>
    %cst_15 = arith.constant dense<0.000000e+00> : vector<256x128xf32>
    %25 = tpu.matmul %22, %24, %cst_15 {dimension_numbers = #tpu.dot_dimension_numbers<[1], [0], [0], [1], [0, 0, 1, 1], [], []>} : vector<256x32xf32>, vector<32x128xf32>, vector<256x128xf32> -> vector<256x128xf32>
    %26 = arith.addf %20, %25 : vector<256x128xf32>
    %27 = vector.extract_strided_slice %1 {offsets = [1, 1, 0], sizes = [16, 16, 32], strides = [1, 1, 1]} : vector<18x18x32xf32> to vector<16x16x32xf32>
    %28 = vector.shape_cast %27 : vector<16x16x32xf32> to vector<256x32xf32>
    %c4 = arith.constant 4 : index
    %c0_16 = arith.constant 0 : index
    %c0_17 = arith.constant 0 : index
    %29 = vector.load %arg2[%c4, %c0_16, %c0_17] : memref<9x32x128xf32, #tpu.memory_space<vmem>>, vector<1x32x128xf32>
    %30 = vector.shape_cast %29 : vector<1x32x128xf32> to vector<32x128xf32>
    %cst_18 = arith.constant dense<0.000000e+00> : vector<256x128xf32>
    %31 = tpu.matmul %28, %30, %cst_18 {dimension_numbers = #tpu.dot_dimension_numbers<[1], [0], [0], [1], [0, 0, 1, 1], [], []>} : vector<256x32xf32>, vector<32x128xf32>, vector<256x128xf32> -> vector<256x128xf32>
    %32 = arith.addf %26, %31 : vector<256x128xf32>
    %33 = vector.extract_strided_slice %1 {offsets = [1, 2, 0], sizes = [16, 16, 32], strides = [1, 1, 1]} : vector<18x18x32xf32> to vector<16x16x32xf32>
    %34 = vector.shape_cast %33 : vector<16x16x32xf32> to vector<256x32xf32>
    %c5 = arith.constant 5 : index
    %c0_19 = arith.constant 0 : index
    %c0_20 = arith.constant 0 : index
    %35 = vector.load %arg2[%c5, %c0_19, %c0_20] : memref<9x32x128xf32, #tpu.memory_space<vmem>>, vector<1x32x128xf32>
    %36 = vector.shape_cast %35 : vector<1x32x128xf32> to vector<32x128xf32>
    %cst_21 = arith.constant dense<0.000000e+00> : vector<256x128xf32>
    %37 = tpu.matmul %34, %36, %cst_21 {dimension_numbers = #tpu.dot_dimension_numbers<[1], [0], [0], [1], [0, 0, 1, 1], [], []>} : vector<256x32xf32>, vector<32x128xf32>, vector<256x128xf32> -> vector<256x128xf32>
    %38 = arith.addf %32, %37 : vector<256x128xf32>
    %39 = vector.extract_strided_slice %1 {offsets = [2, 0, 0], sizes = [16, 16, 32], strides = [1, 1, 1]} : vector<18x18x32xf32> to vector<16x16x32xf32>
    %40 = vector.shape_cast %39 : vector<16x16x32xf32> to vector<256x32xf32>
    %c6 = arith.constant 6 : index
    %c0_22 = arith.constant 0 : index
    %c0_23 = arith.constant 0 : index
    %41 = vector.load %arg2[%c6, %c0_22, %c0_23] : memref<9x32x128xf32, #tpu.memory_space<vmem>>, vector<1x32x128xf32>
    %42 = vector.shape_cast %41 : vector<1x32x128xf32> to vector<32x128xf32>
    %cst_24 = arith.constant dense<0.000000e+00> : vector<256x128xf32>
    %43 = tpu.matmul %40, %42, %cst_24 {dimension_numbers = #tpu.dot_dimension_numbers<[1], [0], [0], [1], [0, 0, 1, 1], [], []>} : vector<256x32xf32>, vector<32x128xf32>, vector<256x128xf32> -> vector<256x128xf32>
    %44 = arith.addf %38, %43 : vector<256x128xf32>
    %45 = vector.extract_strided_slice %1 {offsets = [2, 1, 0], sizes = [16, 16, 32], strides = [1, 1, 1]} : vector<18x18x32xf32> to vector<16x16x32xf32>
    %46 = vector.shape_cast %45 : vector<16x16x32xf32> to vector<256x32xf32>
    %c7 = arith.constant 7 : index
    %c0_25 = arith.constant 0 : index
    %c0_26 = arith.constant 0 : index
    %47 = vector.load %arg2[%c7, %c0_25, %c0_26] : memref<9x32x128xf32, #tpu.memory_space<vmem>>, vector<1x32x128xf32>
    %48 = vector.shape_cast %47 : vector<1x32x128xf32> to vector<32x128xf32>
    %cst_27 = arith.constant dense<0.000000e+00> : vector<256x128xf32>
    %49 = tpu.matmul %46, %48, %cst_27 {dimension_numbers = #tpu.dot_dimension_numbers<[1], [0], [0], [1], [0, 0, 1, 1], [], []>} : vector<256x32xf32>, vector<32x128xf32>, vector<256x128xf32> -> vector<256x128xf32>
    %50 = arith.addf %44, %49 : vector<256x128xf32>
    %51 = vector.extract_strided_slice %1 {offsets = [2, 2, 0], sizes = [16, 16, 32], strides = [1, 1, 1]} : vector<18x18x32xf32> to vector<16x16x32xf32>
    %52 = vector.shape_cast %51 : vector<16x16x32xf32> to vector<256x32xf32>
    %c8 = arith.constant 8 : index
    %c0_28 = arith.constant 0 : index
    %c0_29 = arith.constant 0 : index
    %53 = vector.load %arg2[%c8, %c0_28, %c0_29] : memref<9x32x128xf32, #tpu.memory_space<vmem>>, vector<1x32x128xf32>
    %54 = vector.shape_cast %53 : vector<1x32x128xf32> to vector<32x128xf32>
    %cst_30 = arith.constant dense<0.000000e+00> : vector<256x128xf32>
    %55 = tpu.matmul %52, %54, %cst_30 {dimension_numbers = #tpu.dot_dimension_numbers<[1], [0], [0], [1], [0, 0, 1, 1], [], []>} : vector<256x32xf32>, vector<32x128xf32>, vector<256x128xf32> -> vector<256x128xf32>
    %56 = arith.addf %50, %55 : vector<256x128xf32>
    %c0_31 = arith.constant 0 : index
    %c0_32 = arith.constant 0 : index
    %57 = vector.load %arg3[%c0_31, %c0_32] : memref<1x128xf32, #tpu.memory_space<vmem>>, vector<1x128xf32>
    %58 = vector.broadcast %57 : vector<1x128xf32> to vector<256x128xf32>
    %59 = arith.mulf %56, %58 : vector<256x128xf32>
    %c0_33 = arith.constant 0 : index
    %c0_34 = arith.constant 0 : index
    %60 = vector.load %arg4[%c0_33, %c0_34] : memref<1x128xf32, #tpu.memory_space<vmem>>, vector<1x128xf32>
    %61 = vector.broadcast %60 : vector<1x128xf32> to vector<256x128xf32>
    %62 = arith.addf %59, %61 : vector<256x128xf32>
    %cst_35 = arith.constant 0.000000e+00 : f32
    %63 = vector.broadcast %cst_35 : f32 to vector<256x128xf32>
    %64 = arith.maximumf %62, %63 : vector<256x128xf32>
    %65 = vector.shape_cast %64 : vector<256x128xf32> to vector<1x16x16x128xf32>
    %c0_36 = arith.constant 0 : index
    %c0_37 = arith.constant 0 : index
    %c0_38 = arith.constant 0 : index
    %c0_39 = arith.constant 0 : index
    %66 = vector.load %arg5[%c0_36, %c0_37, %c0_38, %c0_39] : memref<1x16x16x128xf32, #tpu.memory_space<vmem>>, vector<1x16x16x128xf32>
    tpu.vector_store %arg5[%c0_36, %c0_37, %c0_38, %c0_39], %65 {strides = array<i32>} : memref<1x16x16x128xf32, #tpu.memory_space<vmem>>, vector<1x16x16x128xf32>,
    return
  }
  func.func @transform_0(%arg0: i32) -> (i32, i32, i32, i32) {
    %c0_i32 = arith.constant 0 : i32
    %c0_i32_0 = arith.constant 0 : i32
    %c0_i32_1 = arith.constant 0 : i32
    %c0_i32_2 = arith.constant 0 : i32
    return %arg0, %c0_i32, %c0_i32_0, %c0_i32_1 : i32, i32, i32, i32
  }
  func.func @transform_1(%arg0: i32) -> (i32, i32, i32) {
    %c0_i32 = arith.constant 0 : i32
    %c0_i32_0 = arith.constant 0 : i32
    %c0_i32_1 = arith.constant 0 : i32
    %c0_i32_2 = arith.constant 0 : i32
    return %c0_i32, %c0_i32_0, %c0_i32_1 : i32, i32, i32
  }
  func.func @transform_2(%arg0: i32) -> (i32, i32) {
    %c0_i32 = arith.constant 0 : i32
    %c0_i32_0 = arith.constant 0 : i32
    %c0_i32_1 = arith.constant 0 : i32
    return %c0_i32, %c0_i32_0 : i32, i32
  }
  func.func @transform_3(%arg0: i32) -> (i32, i32) {
    %c0_i32 = arith.constant 0 : i32
    %c0_i32_0 = arith.constant 0 : i32
    %c0_i32_1 = arith.constant 0 : i32
    return %c0_i32, %c0_i32_0 : i32, i32
  }
  func.func @transform_4(%arg0: i32) -> (i32, i32, i32, i32) {
    %c0_i32 = arith.constant 0 : i32
    %c0_i32_0 = arith.constant 0 : i32
    %c0_i32_1 = arith.constant 0 : i32
    %c0_i32_2 = arith.constant 0 : i32
    return %arg0, %c0_i32, %c0_i32_0, %c0_i32_1 : i32, i32, i32, i32
  }
}

</mosaic_0001>

<llo_original>
// kernel: tpu_custom_call.1
$region0: #{tpu_custom_call.1}
  #allocation0 [shape = 'u32[]', space=smem, size = 0x4, offset = 0x4, fixed_abs, tag = 'smem constant byte address 0x4 - core index']
  #allocation1 [shape = 'u32[72,128]{1,0:T(1,128)}', space=vmem, size = 0x9000, scoped, tag = 'internal scratch']
  %s0 = inlined_call_operand.vmem [shape: f32[2,18,18,32], index: 0, kind: input, shape index: {}]
  %s1 = inlined_call_operand.vmem [shape: f32[9,32,128], index: 1, kind: input, shape index: {}]
  %s2 = inlined_call_operand.vmem [shape: f32[1,128], index: 2, kind: input, shape index: {}]
  %s3 = inlined_call_operand.vmem [shape: f32[1,128], index: 3, kind: input, shape index: {}]
  %s4 = inlined_call_operand.hbm [shape: f32[2,16,16,128], index: 4, kind: output, shape index: {}]
  %s5 = sld [smem:[#allocation0]]
  $region49: #{tpu_custom_call.1} parent=0
    _
  %s7 = ssub.s32 1, %s5
  %s8 = scalar_select 0, %s7, %s5
  $region1: #{tpu_custom_call.1} parent=0
    #allocation2 [shape = 'u8[262144]{0}', space=vmem, size = 0x40000, scoped, tag = 'output window, operand 0']
    #allocation3 [shape = 's32[2]{0}', space=sflag, size = 0x8, scoped, tag = 'scoped memory for tpu_custom_call.1']
    %9 = vsyncpa [#allocation3], 0
    %s10 = scalar_lea.sflag [#allocation3], 1
    %11 = vsyncpa %s10, 0
    loop: start=0, step=1, limit=4
    $region2: #{tpu_custom_call.1} parent=1 // loop_pre_header
      _
    $region3: #{tpu_custom_call.1} parent=1 // loop_header
      %s13 = sphi 0, %s17
      %p14 = scmp.ge.s32.totalorder %s13, 4
      %s23 = sphi 0, %s25
      %s26 = sphi 0, %s23
      %s27 = sphi 0, %s26
      %s43 = sphi 0, %s27
      %s47 = sphi 0, %s47
      %s49 = sphi 0, %s47
      %s50 = sphi 0, %s49
      %s64 = sphi 0, %s50
      %s68 = sphi 0, %s68
      %s70 = sphi 0, %s68
      %s71 = sphi 0, %s70
      %s85 = sphi 0, %s71
      %s89 = sphi 0, %s89
      %s91 = sphi 0, %s89
      %s92 = sphi 0, %s91
      %s106 = sphi 0, %s92
      %s112 = sphi 0, %s114
      %s115 = sphi 0, %s112
      %s116 = sphi 0, %s115
      %s132 = sphi 0, %s116
    $region4: #{tpu_custom_call.1} parent=1 // loop_header_branch
      %16 = sbr.rel (%p14) target = $region8
    $region5: #{tpu_custom_call.1} parent=1 // loop_body
      %s18 = ssub.s32 %s13, 1
      %s19 = ssub.s32 %s13, 2
      %s20 = sadd.s32 %s13, 1
      %s21 = ssub.s32 %s13, %s20
      %p22 = scmp.eq.s32.totalorder %s21, 0
      %s24 = sadd.s32 %s23, 1
      %s25 = scalar_select %p22, %s23, %s24
      %p28 = pneg %p22
      %p29 = scmp.eq.s32.totalorder %s13, 1
      %p30 = por %p28, %p29
      %p31 = scmp.ne.s32.totalorder %s23, %s26
      %p32 = scmp.eq.s32.totalorder %s13, 0
      %p33 = por %p31, %p32
      %p34 = scmp.ne.s32.totalorder %s23, %s26
      %p35 = scmp.eq.s32.totalorder %s18, 1
      %p36 = por %p34, %p35
      %p37 = scmp.ne.s32.totalorder %s26, %s27
      %p38 = scmp.eq.s32.totalorder %s18, 0
      %p39 = por %p37, %p38
      %p40 = scmp.ne.s32.totalorder %s26, %s27
      %p41 = scmp.eq.s32.totalorder %s19, 1
      %p42 = por %p40, %p41
      %p44 = scmp.ne.s32.totalorder %s27, %s43
      %p45 = scmp.eq.s32.totalorder %s19, 0
      %p46 = por %p44, %p45
      %s48 = sadd.s32 %s47, 1
      %p51 = scmp.eq.s32.totalorder %s13, 1
      %p52 = scmp.ne.s32.totalorder %s47, %s49
      %p53 = scmp.eq.s32.totalorder %s13, 0
      %p54 = por %p52, %p53
      %p55 = scmp.ne.s32.totalorder %s47, %s49
      %p56 = scmp.eq.s32.totalorder %s18, 1
      %p57 = por %p55, %p56
      %p58 = scmp.ne.s32.totalorder %s49, %s50
      %p59 = scmp.eq.s32.totalorder %s18, 0
      %p60 = por %p58, %p59
      %p61 = scmp.ne.s32.totalorder %s49, %s50
      %p62 = scmp.eq.s32.totalorder %s19, 1
      %p63 = por %p61, %p62
      %p65 = scmp.ne.s32.totalorder %s50, %s64
      %p66 = scmp.eq.s32.totalorder %s19, 0
      %p67 = por %p65, %p66
      %s69 = sadd.s32 %s68, 1
      %p72 = scmp.eq.s32.totalorder %s13, 1
      %p73 = scmp.ne.s32.totalorder %s68, %s70
      %p74 = scmp.eq.s32.totalorder %s13, 0
      %p75 = por %p73, %p74
      %p76 = scmp.ne.s32.totalorder %s68, %s70
      %p77 = scmp.eq.s32.totalorder %s18, 1
      %p78 = por %p76, %p77
      %p79 = scmp.ne.s32.totalorder %s70, %s71
      %p80 = scmp.eq.s32.totalorder %s18, 0
      %p81 = por %p79, %p80
      %p82 = scmp.ne.s32.totalorder %s70, %s71
      %p83 = scmp.eq.s32.totalorder %s19, 1
      %p84 = por %p82, %p83
      %p86 = scmp.ne.s32.totalorder %s71, %s85
      %p87 = scmp.eq.s32.totalorder %s19, 0
      %p88 = por %p86, %p87
      %s90 = sadd.s32 %s89, 1
      %p93 = scmp.eq.s32.totalorder %s13, 1
      %p94 = scmp.ne.s32.totalorder %s89, %s91
      %p95 = scmp.eq.s32.totalorder %s13, 0
      %p96 = por %p94, %p95
      %p97 = scmp.ne.s32.totalorder %s89, %s91
      %p98 = scmp.eq.s32.totalorder %s18, 1
      %p99 = por %p97, %p98
      %p100 = scmp.ne.s32.totalorder %s91, %s92
      %p101 = scmp.eq.s32.totalorder %s18, 0
      %p102 = por %p100, %p101
      %p103 = scmp.ne.s32.totalorder %s91, %s92
      %p104 = scmp.eq.s32.totalorder %s19, 1
      %p105 = por %p103, %p104
      %p107 = scmp.ne.s32.totalorder %s92, %s106
      %p108 = scmp.eq.s32.totalorder %s19, 0
      %p109 = por %p107, %p108
      %s110 = ssub.s32 %s13, %s20
      %p111 = scmp.eq.s32.totalorder %s110, 0
      %s113 = sadd.s32 %s112, 1
      %s114 = scalar_select %p111, %s112, %s113
      %p117 = pneg %p111
      %p118 = scmp.eq.s32.totalorder %s13, 1
      %p119 = por %p117, %p118
      %p120 = scmp.ne.s32.totalorder %s112, %s115
      %p121 = scmp.eq.s32.totalorder %s13, 0
      %p122 = por %p120, %p121
      %p123 = scmp.ne.s32.totalorder %s112, %s115
      %p124 = scmp.eq.s32.totalorder %s18, 1
      %p125 = por %p123, %p124
      %p126 = scmp.ne.s32.totalorder %s115, %s116
      %p127 = scmp.eq.s32.totalorder %s18, 0
      %p128 = por %p126, %p127
      %p129 = scmp.ne.s32.totalorder %s115, %s116
      %p130 = scmp.eq.s32.totalorder %s19, 1
      %p131 = por %p129, %p130
      %p133 = scmp.ne.s32.totalorder %s116, %s132
      %p134 = scmp.eq.s32.totalorder %s19, 0
      %p135 = por %p133, %p134
      %p136 = scmp.le.s32.totalorder 1, %s13
      %p137 = scmp.lt.s32.totalorder %s13, 3
      %p138 = pnand %p136, %p137
      %p139 = pneg %p138
      // Predicated region
      $region9: #{tpu_custom_call.1} parent=5 // pred_check
        _
      $region10: #{tpu_custom_call.1} parent=5 // pred_check_branch
        %141 = sbr.rel (%p138) target = $region12
      $region11: #{tpu_custom_call.1} parent=5 // pred_region
        %s142 = ssub.s32 %s13, 1
        // Predicated region
        $region13: #{tpu_custom_call.1} parent=11 // pred_check
          %p143 = pneg %p60
        $region14: #{tpu_custom_call.1} parent=11 // pred_check_branch
          %145 = sbr.rel (%p143) target = $region16
        $region15: #{tpu_custom_call.1} parent=11 // pred_region
          _
        $region16: #{tpu_custom_call.1} parent=11 // pred_fallthru
          _
        // Predicated region
        $region17: #{tpu_custom_call.1} parent=11 // pred_check
          %p146 = pneg %p81
        $region18: #{tpu_custom_call.1} parent=11 // pred_check_branch
          %148 = sbr.rel (%p146) target = $region20
        $region19: #{tpu_custom_call.1} parent=11 // pred_region
          _
        $region20: #{tpu_custom_call.1} parent=11 // pred_fallthru
          _
        // Predicated region
        $region21: #{tpu_custom_call.1} parent=11 // pred_check
          %p149 = pneg %p102
        $region22: #{tpu_custom_call.1} parent=11 // pred_check_branch
          %151 = sbr.rel (%p149) target = $region24
        $region23: #{tpu_custom_call.1} parent=11 // pred_region
          _
        $region24: #{tpu_custom_call.1} parent=11 // pred_fallthru
          _
      $region12: #{tpu_custom_call.1} parent=5 // pred_fallthru
        _
      %p152 = scmp.lt.s32.totalorder %s13, 2
      // Predicated region
      $region25: #{tpu_custom_call.1} parent=5 // pred_check
        %p153 = pneg %p152
      $region26: #{tpu_custom_call.1} parent=5 // pred_check_branch
        %155 = sbr.rel (%p153) target = $region28
      $region27: #{tpu_custom_call.1} parent=5 // pred_region
        // Predicated region
        $region29: #{tpu_custom_call.1} parent=27 // pred_check
          %p156 = pneg %p33
        $region30: #{tpu_custom_call.1} parent=27 // pred_check_branch
          %158 = sbr.rel (%p156) target = $region32
        $region31: #{tpu_custom_call.1} parent=27 // pred_region
          %p159 = scmp.lt.s32.totalorder %s13, 1
          %s160 = scalar_select %p159, %s13, 1
          %s161 = smul.addr %s160, 54
          %s162 = smul.addr %s161, 8
          %s163 = scalar_lea.vmem %s0, %s162
        $region32: #{tpu_custom_call.1} parent=27 // pred_fallthru
          _
      $region28: #{tpu_custom_call.1} parent=5 // pred_fallthru
        _
      %p164 = scmp.le.s32.totalorder 1, %s13
      %p165 = scmp.lt.s32.totalorder %s13, 3
      %p166 = pnand %p164, %p165
      %p167 = pneg %p166
      // Predicated region
      $region33: #{tpu_custom_call.1} parent=5 // pred_check
        _
      $region34: #{tpu_custom_call.1} parent=5 // pred_check_branch
        %169 = sbr.rel (%p166) target = $region36
      $region35: #{tpu_custom_call.1} parent=5 // pred_region
        %s170 = ssub.s32 %s13, 1
        %p171 = scmp.lt.s32.totalorder %s18, 1
        %s172 = scalar_select %p171, %s18, 1
        %s173 = smul.addr %s172, 54
        %s174 = smul.addr %s173, 8
        %s175 = scalar_lea.vmem %s0, %s174
        %p176 = pneg %p39
        %p177 = pneg %p36
        %p178 = pneg %p60
        %p179 = pneg %p57
        %p180 = pneg %p81
        %p181 = pneg %p78
        %p182 = pneg %p102
        %p183 = pneg %p99
        %p184 = pneg %p128
        %p185 = pneg %p125
        %s186 = sand.u32 %s115, 1
        %s187 = scalar_lea.sflag [#allocation3], %s186
        %s188 = sand.u32 %s115, 1
        %s189 = smul.addr %s188, 256
        %s190 = scalar_lea.vmem [#allocation2], %s189
        %p191 = scmp.lt.s32.totalorder %s18, 1
        %s192 = scalar_select %p191, %s18, 1
        %s193 = smul.addr %s192, 54
        %s194 = smul.addr %s193, 8
        %s195 = scalar_lea.vmem %s0, %s194
        %v196 = vld [vmem:[%s195] sm:$0xff]
        %v197 = vld [vmem:[%s195 + $0x8] sm:$0xff]
        %v198 = vld [vmem:[%s195 + $0x10] sm:$0x3]
        %v199 = vld [vmem:[%s195 + $0x18] sm:$0xff]
        %v200 = vld [vmem:[%s195 + $0x20] sm:$0xff]
        %v201 = vld [vmem:[%s195 + $0x28] sm:$0x3]
        %v202 = vld [vmem:[%s195 + $0x30] sm:$0xff]
        %v203 = vld [vmem:[%s195 + $0x38] sm:$0xff]
        %v204 = vld [vmem:[%s195 + $0x40] sm:$0x3]
        %v205 = vld [vmem:[%s195 + $0x48] sm:$0xff]
        %v206 = vld [vmem:[%s195 + $0x50] sm:$0xff]
        %v207 = vld [vmem:[%s195 + $0x58] sm:$0x3]
        %v208 = vld [vmem:[%s195 + $0x60] sm:$0xff]
        %v209 = vld [vmem:[%s195 + $0x68] sm:$0xff]
        %v210 = vld [vmem:[%s195 + $0x70] sm:$0x3]
        %v211 = vld [vmem:[%s195 + $0x78] sm:$0xff]
        %v212 = vld [vmem:[%s195 + $0x80] sm:$0xff]
        %v213 = vld [vmem:[%s195 + $0x88] sm:$0x3]
        %v214 = vld [vmem:[%s195 + $0x90] sm:$0xff]
        %v215 = vld [vmem:[%s195 + $0x98] sm:$0xff]
        %v216 = vld [vmem:[%s195 + $0xa0] sm:$0x3]
        %v217 = vld [vmem:[%s195 + $0xa8] sm:$0xff]
        %v218 = vld [vmem:[%s195 + $0xb0] sm:$0xff]
        %v219 = vld [vmem:[%s195 + $0xb8] sm:$0x3]
        %v220 = vld [vmem:[%s195 + $0xc0] sm:$0xff]
        %v221 = vld [vmem:[%s195 + $0xc8] sm:$0xff]
        %v222 = vld [vmem:[%s195 + $0xd0] sm:$0x3]
        %v223 = vld [vmem:[%s195 + $0xd8] sm:$0xff]
        %v224 = vld [vmem:[%s195 + $0xe0] sm:$0xff]
        %v225 = vld [vmem:[%s195 + $0xe8] sm:$0x3]
        %v226 = vld [vmem:[%s195 + $0xf0] sm:$0xff]
        %v227 = vld [vmem:[%s195 + $0xf8] sm:$0xff]
        %v228 = vld [vmem:[%s195 + $0x100] sm:$0x3]
        %v229 = vld [vmem:[%s195 + $0x108] sm:$0xff]
        %v230 = vld [vmem:[%s195 + $0x110] sm:$0xff]
        %v231 = vld [vmem:[%s195 + $0x118] sm:$0x3]
        %v232 = vld [vmem:[%s195 + $0x120] sm:$0xff]
        %v233 = vld [vmem:[%s195 + $0x128] sm:$0xff]
        %v234 = vld [vmem:[%s195 + $0x130] sm:$0x3]
        %v235 = vld [vmem:[%s195 + $0x138] sm:$0xff]
        %v236 = vld [vmem:[%s195 + $0x140] sm:$0xff]
        %v237 = vld [vmem:[%s195 + $0x148] sm:$0x3]
        %v238 = vld [vmem:[%s195 + $0x150] sm:$0xff]
        %v239 = vld [vmem:[%s195 + $0x158] sm:$0xff]
        %v240 = vld [vmem:[%s195 + $0x160] sm:$0x3]
        %v241 = vld [vmem:[%s195 + $0x168] sm:$0xff]
        %v242 = vld [vmem:[%s195 + $0x170] sm:$0xff]
        %v243 = vld [vmem:[%s195 + $0x178] sm:$0x3]
        %v244 = vld [vmem:[%s195 + $0x180] sm:$0xff]
        %v245 = vld [vmem:[%s195 + $0x188] sm:$0xff]
        %v246 = vld [vmem:[%s195 + $0x190] sm:$0x3]
        %v247 = vld [vmem:[%s195 + $0x198] sm:$0xff]
        %v248 = vld [vmem:[%s195 + $0x1a0] sm:$0xff]
        %v249 = vld [vmem:[%s195 + $0x1a8] sm:$0x3]
        %v250 = vld [vmem:[%s1] sm:$0xff]
        %v251 = vld [vmem:[%s1 + $0x8] sm:$0xff]
        %v252 = vld [vmem:[%s1 + $0x10] sm:$0xff]
        %v253 = vld [vmem:[%s1 + $0x18] sm:$0xff]
        %vm302 = vcmask 1046528
        %v303 = vrot.slane %v196, 1
        %v304 = vrot.slane %v197, 1
        %v305 = vsel %vm302, %v303, %v304
        %v306 = vrot.slane %v198, 1
        %v307 = vsel %vm302, %v304, %v306
        %v308 = vrot.slane %v199, 1
        %v309 = vrot.slane %v200, 1
        %v310 = vsel %vm302, %v308, %v309
        %v311 = vrot.slane %v201, 1
        %v312 = vsel %vm302, %v309, %v311
        %v313 = vrot.slane %v202, 1
        %v314 = vrot.slane %v203, 1
        %v315 = vsel %vm302, %v313, %v314
        %v316 = vrot.slane %v204, 1
        %v317 = vsel %vm302, %v314, %v316
        %v318 = vrot.slane %v205, 1
        %v319 = vrot.slane %v206, 1
        %v320 = vsel %vm302, %v318, %v319
        %v321 = vrot.slane %v207, 1
        %v322 = vsel %vm302, %v319, %v321
        %v323 = vrot.slane %v208, 1
        %v324 = vrot.slane %v209, 1
        %v325 = vsel %vm302, %v323, %v324
        %v326 = vrot.slane %v210, 1
        %v327 = vsel %vm302, %v324, %v326
        %v328 = vrot.slane %v211, 1
        %v329 = vrot.slane %v212, 1
        %v330 = vsel %vm302, %v328, %v329
        %v331 = vrot.slane %v213, 1
        %v332 = vsel %vm302, %v329, %v331
        %v333 = vrot.slane %v214, 1
        %v334 = vrot.slane %v215, 1
        %v335 = vsel %vm302, %v333, %v334
        %v336 = vrot.slane %v216, 1
        %v337 = vsel %vm302, %v334, %v336
        %v338 = vrot.slane %v217, 1
        %v339 = vrot.slane %v218, 1
        %v340 = vsel %vm302, %v338, %v339
        %v341 = vrot.slane %v219, 1
        %v342 = vsel %vm302, %v339, %v341
        %v343 = vrot.slane %v220, 1
        %v344 = vrot.slane %v221, 1
        %v345 = vsel %vm302, %v343, %v344
        %v346 = vrot.slane %v222, 1
        %v347 = vsel %vm302, %v344, %v346
        %v348 = vrot.slane %v223, 1
        %v349 = vrot.slane %v224, 1
        %v350 = vsel %vm302, %v348, %v349
        %v351 = vrot.slane %v225, 1
        %v352 = vsel %vm302, %v349, %v351
        %v353 = vrot.slane %v226, 1
        %v354 = vrot.slane %v227, 1
        %v355 = vsel %vm302, %v353, %v354
        %v356 = vrot.slane %v228, 1
        %v357 = vsel %vm302, %v354, %v356
        %v358 = vrot.slane %v229, 1
        %v359 = vrot.slane %v230, 1
        %v360 = vsel %vm302, %v358, %v359
        %v361 = vrot.slane %v231, 1
        %v362 = vsel %vm302, %v359, %v361
        %v363 = vrot.slane %v232, 1
        %v364 = vrot.slane %v233, 1
        %v365 = vsel %vm302, %v363, %v364
        %v366 = vrot.slane %v234, 1
        %v367 = vsel %vm302, %v364, %v366
        %v368 = vrot.slane %v235, 1
        %v369 = vrot.slane %v236, 1
        %v370 = vsel %vm302, %v368, %v369
        %v371 = vrot.slane %v237, 1
        %v372 = vsel %vm302, %v369, %v371
        %v373 = vrot.slane %v238, 1
        %v374 = vrot.slane %v239, 1
        %v375 = vsel %vm302, %v373, %v374
        %v376 = vrot.slane %v240, 1
        %v377 = vsel %vm302, %v374, %v376
        %v378 = vrot.slane %v241, 1
        %v379 = vrot.slane %v242, 1
        %v380 = vsel %vm302, %v378, %v379
        %v381 = vrot.slane %v243, 1
        %v382 = vsel %vm302, %v379, %v381
        %s383 = scalar_lea.vmem %s1, 32
        %v384 = vld [vmem:[%s383] sm:$0xff]
        %v385 = vld [vmem:[%s383 + $0x8] sm:$0xff]
        %v386 = vld [vmem:[%s383 + $0x10] sm:$0xff]
        %v387 = vld [vmem:[%s383 + $0x18] sm:$0xff]
        %vm388 = vcmask 261120
        %v389 = vsel %vm388, %v305, 0
        %v391 = vsel %vm388, %v307, 0
        %v393 = vsel %vm388, %v310, 0
        %v395 = vsel %vm388, %v312, 0
        %v397 = vsel %vm388, %v315, 0
        %v399 = vsel %vm388, %v317, 0
        %v401 = vsel %vm388, %v320, 0
        %v403 = vsel %vm388, %v322, 0
        %v405 = vsel %vm388, %v325, 0
        %v407 = vsel %vm388, %v327, 0
        %v409 = vsel %vm388, %v330, 0
        %v411 = vsel %vm388, %v332, 0
        %v413 = vsel %vm388, %v335, 0
        %v415 = vsel %vm388, %v337, 0
        %v417 = vsel %vm388, %v340, 0
        %v419 = vsel %vm388, %v342, 0
        %v421 = vsel %vm388, %v345, 0
        %v423 = vsel %vm388, %v347, 0
        %v425 = vsel %vm388, %v350, 0
        %v427 = vsel %vm388, %v352, 0
        %v429 = vsel %vm388, %v355, 0
        %v431 = vsel %vm388, %v357, 0
        %v433 = vsel %vm388, %v360, 0
        %v435 = vsel %vm388, %v362, 0
        %v437 = vsel %vm388, %v365, 0
        %v439 = vsel %vm388, %v367, 0
        %v441 = vsel %vm388, %v370, 0
        %v443 = vsel %vm388, %v372, 0
        %v445 = vsel %vm388, %v375, 0
        %v447 = vsel %vm388, %v377, 0
        %v449 = vsel %vm388, %v380, 0
        %v451 = vsel %vm388, %v382, 0
        %453 = vmatpush.msra.mxu0 0.0
        %454 = vmatpush.msra.mxu0 0.0
        %455 = vmatpush.msra.mxu0 0.0
        %456 = vmatpush.msra.mxu0 0.0
        %457 = vmatpush.msra.mxu0 0.0
        %458 = vmatpush.msra.mxu0 0.0
        %459 = vmatpush.msra.mxu0 0.0
        %460 = vmatpush.msra.mxu0 0.0
        %461 = vmatpush.msra.mxu0 0.0
        %462 = vmatpush.msra.mxu0 0.0
        %463 = vmatpush.msra.mxu0 0.0
        %464 = vmatpush.msra.mxu0 0.0
        %465 = vmatpush.msra.mxu0 %v387
        %466 = vmatpush.msra.mxu0 %v386
        %467 = vmatpush.msra.mxu0 %v385
        %468 = vmatpush.msra.mxu0 %v384
        %469 = vmatmul.f32.gmra.mxu0 %v389
        %v470 = vpop.f32.mrf.mxu0
        %v471 = vadd.f32 0.0, %v470
        %472 = vmatmul.f32.gmra.mxu0 %v391
        %v473 = vpop.f32.mrf.mxu0
        %v474 = vadd.f32 0.0, %v473
        %475 = vmatmul.f32.gmra.mxu0 %v393
        %v476 = vpop.f32.mrf.mxu0
        %v477 = vadd.f32 0.0, %v476
        %478 = vmatmul.f32.gmra.mxu0 %v395
        %v479 = vpop.f32.mrf.mxu0
        %v480 = vadd.f32 0.0, %v479
        %481 = vmatmul.f32.gmra.mxu0 %v397
        %v482 = vpop.f32.mrf.mxu0
        %v483 = vadd.f32 0.0, %v482
        %484 = vmatmul.f32.gmra.mxu0 %v399
        %v485 = vpop.f32.mrf.mxu0
        %v486 = vadd.f32 0.0, %v485
        %487 = vmatmul.f32.gmra.mxu0 %v401
        %v488 = vpop.f32.mrf.mxu0
        %v489 = vadd.f32 0.0, %v488
        %490 = vmatmul.f32.gmra.mxu0 %v403
        %v491 = vpop.f32.mrf.mxu0
        %v492 = vadd.f32 0.0, %v491
        %493 = vmatmul.f32.gmra.mxu0 %v405
        %v494 = vpop.f32.mrf.mxu0
        %v495 = vadd.f32 0.0, %v494
        %496 = vmatmul.f32.gmra.mxu0 %v407
        %v497 = vpop.f32.mrf.mxu0
        %v498 = vadd.f32 0.0, %v497
        %499 = vmatmul.f32.gmra.mxu0 %v409
        %v500 = vpop.f32.mrf.mxu0
        %v501 = vadd.f32 0.0, %v500
        %502 = vmatmul.f32.gmra.mxu0 %v411
        %v503 = vpop.f32.mrf.mxu0
        %v504 = vadd.f32 0.0, %v503
        %505 = vmatmul.f32.gmra.mxu0 %v413
        %v506 = vpop.f32.mrf.mxu0
        %v507 = vadd.f32 0.0, %v506
        %508 = vmatmul.f32.gmra.mxu0 %v415
        %v509 = vpop.f32.mrf.mxu0
        %v510 = vadd.f32 0.0, %v509
        %511 = vmatmul.f32.gmra.mxu0 %v417
        %v512 = vpop.f32.mrf.mxu0
        %v513 = vadd.f32 0.0, %v512
        %514 = vmatmul.f32.gmra.mxu0 %v419
        %v515 = vpop.f32.mrf.mxu0
        %v516 = vadd.f32 0.0, %v515
        %517 = vmatmul.f32.gmra.mxu0 %v421
        %v518 = vpop.f32.mrf.mxu0
        %v519 = vadd.f32 0.0, %v518
        %520 = vmatmul.f32.gmra.mxu0 %v423
        %v521 = vpop.f32.mrf.mxu0
        %v522 = vadd.f32 0.0, %v521
        %523 = vmatmul.f32.gmra.mxu0 %v425
        %v524 = vpop.f32.mrf.mxu0
        %v525 = vadd.f32 0.0, %v524
        %526 = vmatmul.f32.gmra.mxu0 %v427
        %v527 = vpop.f32.mrf.mxu0
        %v528 = vadd.f32 0.0, %v527
        %529 = vmatmul.f32.gmra.mxu0 %v429
        %v530 = vpop.f32.mrf.mxu0
        %v531 = vadd.f32 0.0, %v530
        %532 = vmatmul.f32.gmra.mxu0 %v431
        %v533 = vpop.f32.mrf.mxu0
        %v534 = vadd.f32 0.0, %v533
        %535 = vmatmul.f32.gmra.mxu0 %v433
        %v536 = vpop.f32.mrf.mxu0
        %v537 = vadd.f32 0.0, %v536
        %538 = vmatmul.f32.gmra.mxu0 %v435
        %v539 = vpop.f32.mrf.mxu0
        %v540 = vadd.f32 0.0, %v539
        %541 = vmatmul.f32.gmra.mxu0 %v437
        %v542 = vpop.f32.mrf.mxu0
        %v543 = vadd.f32 0.0, %v542
        %544 = vmatmul.f32.gmra.mxu0 %v439
        %v545 = vpop.f32.mrf.mxu0
        %v546 = vadd.f32 0.0, %v545
        %547 = vmatmul.f32.gmra.mxu0 %v441
        %v548 = vpop.f32.mrf.mxu0
        %v549 = vadd.f32 0.0, %v548
        %550 = vmatmul.f32.gmra.mxu0 %v443
        %v551 = vpop.f32.mrf.mxu0
        %v552 = vadd.f32 0.0, %v551
        %553 = vmatmul.f32.gmra.mxu0 %v445
        %v554 = vpop.f32.mrf.mxu0
        %v555 = vadd.f32 0.0, %v554
        %556 = vmatmul.f32.gmra.mxu0 %v447
        %v557 = vpop.f32.mrf.mxu0
        %v558 = vadd.f32 0.0, %v557
        %559 = vmatmul.f32.gmra.mxu0 %v449
        %v560 = vpop.f32.mrf.mxu0
        %v561 = vadd.f32 0.0, %v560
        %562 = vmatmul.f32.gmra.mxu0 %v451
        %v563 = vpop.f32.mrf.mxu0
        %v564 = vadd.f32 0.0, %v563
        %565 = vdwg.mxu0
        %v566 = vsel %vm388, %v196, 0
        %v568 = vsel %vm388, %v197, 0
        %v570 = vsel %vm388, %v199, 0
        %v572 = vsel %vm388, %v200, 0
        %v574 = vsel %vm388, %v202, 0
        %v576 = vsel %vm388, %v203, 0
        %v578 = vsel %vm388, %v205, 0
        %v580 = vsel %vm388, %v206, 0
        %v582 = vsel %vm388, %v208, 0
        %v584 = vsel %vm388, %v209, 0
        %v586 = vsel %vm388, %v211, 0
        %v588 = vsel %vm388, %v212, 0
        %v590 = vsel %vm388, %v214, 0
        %v592 = vsel %vm388, %v215, 0
        %v594 = vsel %vm388, %v217, 0
        %v596 = vsel %vm388, %v218, 0
        %v598 = vsel %vm388, %v220, 0
        %v600 = vsel %vm388, %v221, 0
        %v602 = vsel %vm388, %v223, 0
        %v604 = vsel %vm388, %v224, 0
        %v606 = vsel %vm388, %v226, 0
        %v608 = vsel %vm388, %v227, 0
        %v610 = vsel %vm388, %v229, 0
        %v612 = vsel %vm388, %v230, 0
        %v614 = vsel %vm388, %v232, 0
        %v616 = vsel %vm388, %v233, 0
        %v618 = vsel %vm388, %v235, 0
        %v620 = vsel %vm388, %v236, 0
        %v622 = vsel %vm388, %v238, 0
        %v624 = vsel %vm388, %v239, 0
        %v626 = vsel %vm388, %v241, 0
        %v628 = vsel %vm388, %v242, 0
        %630 = vmatpush.msra.mxu0 0.0
        %631 = vmatpush.msra.mxu0 0.0
        %632 = vmatpush.msra.mxu0 0.0
        %633 = vmatpush.msra.mxu0 0.0
        %634 = vmatpush.msra.mxu0 0.0
        %635 = vmatpush.msra.mxu0 0.0
        %636 = vmatpush.msra.mxu0 0.0
        %637 = vmatpush.msra.mxu0 0.0
        %638 = vmatpush.msra.mxu0 0.0
        %639 = vmatpush.msra.mxu0 0.0
        %640 = vmatpush.msra.mxu0 0.0
        %641 = vmatpush.msra.mxu0 0.0
        %642 = vmatpush.msra.mxu0 %v253
        %643 = vmatpush.msra.mxu0 %v252
        %644 = vmatpush.msra.mxu0 %v251
        %645 = vmatpush.msra.mxu0 %v250
        %646 = vmatmul.f32.gmra.mxu0 %v566
        %v647 = vpop.f32.mrf.mxu0
        %v648 = vadd.f32 %v471, %v647
        %649 = vmatmul.f32.gmra.mxu0 %v568
        %v650 = vpop.f32.mrf.mxu0
        %v651 = vadd.f32 %v474, %v650
        %652 = vmatmul.f32.gmra.mxu0 %v570
        %v653 = vpop.f32.mrf.mxu0
        %v654 = vadd.f32 %v477, %v653
        %655 = vmatmul.f32.gmra.mxu0 %v572
        %v656 = vpop.f32.mrf.mxu0
        %v657 = vadd.f32 %v480, %v656
        %658 = vmatmul.f32.gmra.mxu0 %v574
        %v659 = vpop.f32.mrf.mxu0
        %v660 = vadd.f32 %v483, %v659
        %661 = vmatmul.f32.gmra.mxu0 %v576
        %v662 = vpop.f32.mrf.mxu0
        %v663 = vadd.f32 %v486, %v662
        %664 = vmatmul.f32.gmra.mxu0 %v578
        %v665 = vpop.f32.mrf.mxu0
        %v666 = vadd.f32 %v489, %v665
        %667 = vmatmul.f32.gmra.mxu0 %v580
        %v668 = vpop.f32.mrf.mxu0
        %v669 = vadd.f32 %v492, %v668
        %670 = vmatmul.f32.gmra.mxu0 %v582
        %v671 = vpop.f32.mrf.mxu0
        %v672 = vadd.f32 %v495, %v671
        %673 = vmatmul.f32.gmra.mxu0 %v584
        %v674 = vpop.f32.mrf.mxu0
        %v675 = vadd.f32 %v498, %v674
        %676 = vmatmul.f32.gmra.mxu0 %v586
        %v677 = vpop.f32.mrf.mxu0
        %v678 = vadd.f32 %v501, %v677
        %679 = vmatmul.f32.gmra.mxu0 %v588
        %v680 = vpop.f32.mrf.mxu0
        %v681 = vadd.f32 %v504, %v680
        %682 = vmatmul.f32.gmra.mxu0 %v590
        %v683 = vpop.f32.mrf.mxu0
        %v684 = vadd.f32 %v507, %v683
        %685 = vmatmul.f32.gmra.mxu0 %v592
        %v686 = vpop.f32.mrf.mxu0
        %v687 = vadd.f32 %v510, %v686
        %688 = vmatmul.f32.gmra.mxu0 %v594
        %v689 = vpop.f32.mrf.mxu0
        %v690 = vadd.f32 %v513, %v689
        %691 = vmatmul.f32.gmra.mxu0 %v596
        %v692 = vpop.f32.mrf.mxu0
        %v693 = vadd.f32 %v516, %v692
        %694 = vmatmul.f32.gmra.mxu0 %v598
        %v695 = vpop.f32.mrf.mxu0
        %v696 = vadd.f32 %v519, %v695
        %697 = vmatmul.f32.gmra.mxu0 %v600
        %v698 = vpop.f32.mrf.mxu0
        %v699 = vadd.f32 %v522, %v698
        %700 = vmatmul.f32.gmra.mxu0 %v602
        %v701 = vpop.f32.mrf.mxu0
        %v702 = vadd.f32 %v525, %v701
        %703 = vmatmul.f32.gmra.mxu0 %v604
        %v704 = vpop.f32.mrf.mxu0
        %v705 = vadd.f32 %v528, %v704
        %706 = vmatmul.f32.gmra.mxu0 %v606
        %v707 = vpop.f32.mrf.mxu0
        %v708 = vadd.f32 %v531, %v707
        %709 = vmatmul.f32.gmra.mxu0 %v608
        %v710 = vpop.f32.mrf.mxu0
        %v711 = vadd.f32 %v534, %v710
        %712 = vmatmul.f32.gmra.mxu0 %v610
        %v713 = vpop.f32.mrf.mxu0
        %v714 = vadd.f32 %v537, %v713
        %715 = vmatmul.f32.gmra.mxu0 %v612
        %v716 = vpop.f32.mrf.mxu0
        %v717 = vadd.f32 %v540, %v716
        %718 = vmatmul.f32.gmra.mxu0 %v614
        %v719 = vpop.f32.mrf.mxu0
        %v720 = vadd.f32 %v543, %v719
        %721 = vmatmul.f32.gmra.mxu0 %v616
        %v722 = vpop.f32.mrf.mxu0
        %v723 = vadd.f32 %v546, %v722
        %724 = vmatmul.f32.gmra.mxu0 %v618
        %v725 = vpop.f32.mrf.mxu0
        %v726 = vadd.f32 %v549, %v725
        %727 = vmatmul.f32.gmra.mxu0 %v620
        %v728 = vpop.f32.mrf.mxu0
        %v729 = vadd.f32 %v552, %v728
        %730 = vmatmul.f32.gmra.mxu0 %v622
        %v731 = vpop.f32.mrf.mxu0
        %v732 = vadd.f32 %v555, %v731
        %733 = vmatmul.f32.gmra.mxu0 %v624
        %v734 = vpop.f32.mrf.mxu0
        %v735 = vadd.f32 %v558, %v734
        %736 = vmatmul.f32.gmra.mxu0 %v626
        %v737 = vpop.f32.mrf.mxu0
        %v738 = vadd.f32 %v561, %v737
        %739 = vmatmul.f32.gmra.mxu0 %v628
        %v740 = vpop.f32.mrf.mxu0
        %v741 = vadd.f32 %v564, %v740
        %742 = vdwg.mxu0
        %vm743 = vcmask 1045504
        %v744 = vrot.slane %v196, 2
        %v745 = vrot.slane %v197, 2
        %v746 = vsel %vm743, %v744, %v745
        %v747 = vrot.slane %v198, 2
        %v748 = vsel %vm743, %v745, %v747
        %v749 = vrot.slane %v199, 2
        %v750 = vrot.slane %v200, 2
        %v751 = vsel %vm743, %v749, %v750
        %v752 = vrot.slane %v201, 2
        %v753 = vsel %vm743, %v750, %v752
        %v754 = vrot.slane %v202, 2
        %v755 = vrot.slane %v203, 2
        %v756 = vsel %vm743, %v754, %v755
        %v757 = vrot.slane %v204, 2
        %v758 = vsel %vm743, %v755, %v757
        %v759 = vrot.slane %v205, 2
        %v760 = vrot.slane %v206, 2
        %v761 = vsel %vm743, %v759, %v760
        %v762 = vrot.slane %v207, 2
        %v763 = vsel %vm743, %v760, %v762
        %v764 = vrot.slane %v208, 2
        %v765 = vrot.slane %v209, 2
        %v766 = vsel %vm743, %v764, %v765
        %v767 = vrot.slane %v210, 2
        %v768 = vsel %vm743, %v765, %v767
        %v769 = vrot.slane %v211, 2
        %v770 = vrot.slane %v212, 2
        %v771 = vsel %vm743, %v769, %v770
        %v772 = vrot.slane %v213, 2
        %v773 = vsel %vm743, %v770, %v772
        %v774 = vrot.slane %v214, 2
        %v775 = vrot.slane %v215, 2
        %v776 = vsel %vm743, %v774, %v775
        %v777 = vrot.slane %v216, 2
        %v778 = vsel %vm743, %v775, %v777
        %v779 = vrot.slane %v217, 2
        %v780 = vrot.slane %v218, 2
        %v781 = vsel %vm743, %v779, %v780
        %v782 = vrot.slane %v219, 2
        %v783 = vsel %vm743, %v780, %v782
        %v784 = vrot.slane %v220, 2
        %v785 = vrot.slane %v221, 2
        %v786 = vsel %vm743, %v784, %v785
        %v787 = vrot.slane %v222, 2
        %v788 = vsel %vm743, %v785, %v787
        %v789 = vrot.slane %v223, 2
        %v790 = vrot.slane %v224, 2
        %v791 = vsel %vm743, %v789, %v790
        %v792 = vrot.slane %v225, 2
        %v793 = vsel %vm743, %v790, %v792
        %v794 = vrot.slane %v226, 2
        %v795 = vrot.slane %v227, 2
        %v796 = vsel %vm743, %v794, %v795
        %v797 = vrot.slane %v228, 2
        %v798 = vsel %vm743, %v795, %v797
        %v799 = vrot.slane %v229, 2
        %v800 = vrot.slane %v230, 2
        %v801 = vsel %vm743, %v799, %v800
        %v802 = vrot.slane %v231, 2
        %v803 = vsel %vm743, %v800, %v802
        %v804 = vrot.slane %v232, 2
        %v805 = vrot.slane %v233, 2
        %v806 = vsel %vm743, %v804, %v805
        %v807 = vrot.slane %v234, 2
        %v808 = vsel %vm743, %v805, %v807
        %v809 = vrot.slane %v235, 2
        %v810 = vrot.slane %v236, 2
        %v811 = vsel %vm743, %v809, %v810
        %v812 = vrot.slane %v237, 2
        %v813 = vsel %vm743, %v810, %v812
        %v814 = vrot.slane %v238, 2
        %v815 = vrot.slane %v239, 2
        %v816 = vsel %vm743, %v814, %v815
        %v817 = vrot.slane %v240, 2
        %v818 = vsel %vm743, %v815, %v817
        %v819 = vrot.slane %v241, 2
        %v820 = vrot.slane %v242, 2
        %v821 = vsel %vm743, %v819, %v820
        %v822 = vrot.slane %v243, 2
        %v823 = vsel %vm743, %v820, %v822
        %s824 = scalar_lea.vmem %s1, 64
        %v825 = vld [vmem:[%s824] sm:$0xff]
        %v826 = vld [vmem:[%s824 + $0x8] sm:$0xff]
        %v827 = vld [vmem:[%s824 + $0x10] sm:$0xff]
        %v828 = vld [vmem:[%s824 + $0x18] sm:$0xff]
        %v829 = vsel %vm388, %v746, 0
        %v831 = vsel %vm388, %v748, 0
        %v833 = vsel %vm388, %v751, 0
        %v835 = vsel %vm388, %v753, 0
        %v837 = vsel %vm388, %v756, 0
        %v839 = vsel %vm388, %v758, 0
        %v841 = vsel %vm388, %v761, 0
        %v843 = vsel %vm388, %v763, 0
        %v845 = vsel %vm388, %v766, 0
        %v847 = vsel %vm388, %v768, 0
        %v849 = vsel %vm388, %v771, 0
        %v851 = vsel %vm388, %v773, 0
        %v853 = vsel %vm388, %v776, 0
        %v855 = vsel %vm388, %v778, 0
        %v857 = vsel %vm388, %v781, 0
        %v859 = vsel %vm388, %v783, 0
        %v861 = vsel %vm388, %v786, 0
        %v863 = vsel %vm388, %v788, 0
        %v865 = vsel %vm388, %v791, 0
        %v867 = vsel %vm388, %v793, 0
        %v869 = vsel %vm388, %v796, 0
        %v871 = vsel %vm388, %v798, 0
        %v873 = vsel %vm388, %v801, 0
        %v875 = vsel %vm388, %v803, 0
        %v877 = vsel %vm388, %v806, 0
        %v879 = vsel %vm388, %v808, 0
        %v881 = vsel %vm388, %v811, 0
        %v883 = vsel %vm388, %v813, 0
        %v885 = vsel %vm388, %v816, 0
        %v887 = vsel %vm388, %v818, 0
        %v889 = vsel %vm388, %v821, 0
        %v891 = vsel %vm388, %v823, 0
        %893 = vmatpush.msra.mxu0 0.0
        %894 = vmatpush.msra.mxu0 0.0
        %895 = vmatpush.msra.mxu0 0.0
        %896 = vmatpush.msra.mxu0 0.0
        %897 = vmatpush.msra.mxu0 0.0
        %898 = vmatpush.msra.mxu0 0.0
        %899 = vmatpush.msra.mxu0 0.0
        %900 = vmatpush.msra.mxu0 0.0
        %901 = vmatpush.msra.mxu0 0.0
        %902 = vmatpush.msra.mxu0 0.0
        %903 = vmatpush.msra.mxu0 0.0
        %904 = vmatpush.msra.mxu0 0.0
        %905 = vmatpush.msra.mxu0 %v828
        %906 = vmatpush.msra.mxu0 %v827
        %907 = vmatpush.msra.mxu0 %v826
        %908 = vmatpush.msra.mxu0 %v825
        %909 = vmatmul.f32.gmra.mxu0 %v829
        %v910 = vpop.f32.mrf.mxu0
        %v911 = vadd.f32 0.0, %v910
        %912 = vmatmul.f32.gmra.mxu0 %v831
        %v913 = vpop.f32.mrf.mxu0
        %v914 = vadd.f32 0.0, %v913
        %915 = vmatmul.f32.gmra.mxu0 %v833
        %v916 = vpop.f32.mrf.mxu0
        %v917 = vadd.f32 0.0, %v916
        %918 = vmatmul.f32.gmra.mxu0 %v835
        %v919 = vpop.f32.mrf.mxu0
        %v920 = vadd.f32 0.0, %v919
        %921 = vmatmul.f32.gmra.mxu0 %v837
        %v922 = vpop.f32.mrf.mxu0
        %v923 = vadd.f32 0.0, %v922
        %924 = vmatmul.f32.gmra.mxu0 %v839
        %v925 = vpop.f32.mrf.mxu0
        %v926 = vadd.f32 0.0, %v925
        %927 = vmatmul.f32.gmra.mxu0 %v841
        %v928 = vpop.f32.mrf.mxu0
        %v929 = vadd.f32 0.0, %v928
        %930 = vmatmul.f32.gmra.mxu0 %v843
        %v931 = vpop.f32.mrf.mxu0
        %v932 = vadd.f32 0.0, %v931
        %933 = vmatmul.f32.gmra.mxu0 %v845
        %v934 = vpop.f32.mrf.mxu0
        %v935 = vadd.f32 0.0, %v934
        %936 = vmatmul.f32.gmra.mxu0 %v847
        %v937 = vpop.f32.mrf.mxu0
        %v938 = vadd.f32 0.0, %v937
        %939 = vmatmul.f32.gmra.mxu0 %v849
        %v940 = vpop.f32.mrf.mxu0
        %v941 = vadd.f32 0.0, %v940
        %942 = vmatmul.f32.gmra.mxu0 %v851
        %v943 = vpop.f32.mrf.mxu0
        %v944 = vadd.f32 0.0, %v943
        %945 = vmatmul.f32.gmra.mxu0 %v853
        %v946 = vpop.f32.mrf.mxu0
        %v947 = vadd.f32 0.0, %v946
        %948 = vmatmul.f32.gmra.mxu0 %v855
        %v949 = vpop.f32.mrf.mxu0
        %v950 = vadd.f32 0.0, %v949
        %951 = vmatmul.f32.gmra.mxu0 %v857
        %v952 = vpop.f32.mrf.mxu0
        %v953 = vadd.f32 0.0, %v952
        %954 = vmatmul.f32.gmra.mxu0 %v859
        %v955 = vpop.f32.mrf.mxu0
        %v956 = vadd.f32 0.0, %v955
        %957 = vmatmul.f32.gmra.mxu0 %v861
        %v958 = vpop.f32.mrf.mxu0
        %v959 = vadd.f32 0.0, %v958
        %960 = vmatmul.f32.gmra.mxu0 %v863
        %v961 = vpop.f32.mrf.mxu0
        %v962 = vadd.f32 0.0, %v961
        %963 = vmatmul.f32.gmra.mxu0 %v865
        %v964 = vpop.f32.mrf.mxu0
        %v965 = vadd.f32 0.0, %v964
        %966 = vmatmul.f32.gmra.mxu0 %v867
        %v967 = vpop.f32.mrf.mxu0
        %v968 = vadd.f32 0.0, %v967
        %969 = vmatmul.f32.gmra.mxu0 %v869
        %v970 = vpop.f32.mrf.mxu0
        %v971 = vadd.f32 0.0, %v970
        %972 = vmatmul.f32.gmra.mxu0 %v871
        %v973 = vpop.f32.mrf.mxu0
        %v974 = vadd.f32 0.0, %v973
        %975 = vmatmul.f32.gmra.mxu0 %v873
        %v976 = vpop.f32.mrf.mxu0
        %v977 = vadd.f32 0.0, %v976
        %978 = vmatmul.f32.gmra.mxu0 %v875
        %v979 = vpop.f32.mrf.mxu0
        %v980 = vadd.f32 0.0, %v979
        %981 = vmatmul.f32.gmra.mxu0 %v877
        %v982 = vpop.f32.mrf.mxu0
        %v983 = vadd.f32 0.0, %v982
        %984 = vmatmul.f32.gmra.mxu0 %v879
        %v985 = vpop.f32.mrf.mxu0
        %v986 = vadd.f32 0.0, %v985
        %987 = vmatmul.f32.gmra.mxu0 %v881
        %v988 = vpop.f32.mrf.mxu0
        %v989 = vadd.f32 0.0, %v988
        %990 = vmatmul.f32.gmra.mxu0 %v883
        %v991 = vpop.f32.mrf.mxu0
        %v992 = vadd.f32 0.0, %v991
        %993 = vmatmul.f32.gmra.mxu0 %v885
        %v994 = vpop.f32.mrf.mxu0
        %v995 = vadd.f32 0.0, %v994
        %996 = vmatmul.f32.gmra.mxu0 %v887
        %v997 = vpop.f32.mrf.mxu0
        %v998 = vadd.f32 0.0, %v997
        %999 = vmatmul.f32.gmra.mxu0 %v889
        %v1000 = vpop.f32.mrf.mxu0
        %v1001 = vadd.f32 0.0, %v1000
        %1002 = vmatmul.f32.gmra.mxu0 %v891
        %v1003 = vpop.f32.mrf.mxu0
        %v1004 = vadd.f32 0.0, %v1003
        %1005 = vdwg.mxu0
        %v1006 = vadd.f32 %v648, %v911
        %v1007 = vadd.f32 %v651, %v914
        %v1008 = vadd.f32 %v654, %v917
        %v1009 = vadd.f32 %v657, %v920
        %v1010 = vadd.f32 %v660, %v923
        %v1011 = vadd.f32 %v663, %v926
        %v1012 = vadd.f32 %v666, %v929
        %v1013 = vadd.f32 %v669, %v932
        %v1014 = vadd.f32 %v672, %v935
        %v1015 = vadd.f32 %v675, %v938
        %v1016 = vadd.f32 %v678, %v941
        %v1017 = vadd.f32 %v681, %v944
        %v1018 = vadd.f32 %v684, %v947
        %v1019 = vadd.f32 %v687, %v950
        %v1020 = vadd.f32 %v690, %v953
        %v1021 = vadd.f32 %v693, %v956
        %v1022 = vadd.f32 %v696, %v959
        %v1023 = vadd.f32 %v699, %v962
        %v1024 = vadd.f32 %v702, %v965
        %v1025 = vadd.f32 %v705, %v968
        %v1026 = vadd.f32 %v708, %v971
        %v1027 = vadd.f32 %v711, %v974
        %v1028 = vadd.f32 %v714, %v977
        %v1029 = vadd.f32 %v717, %v980
        %v1030 = vadd.f32 %v720, %v983
        %v1031 = vadd.f32 %v723, %v986
        %v1032 = vadd.f32 %v726, %v989
        %v1033 = vadd.f32 %v729, %v992
        %v1034 = vadd.f32 %v732, %v995
        %v1035 = vadd.f32 %v735, %v998
        %v1036 = vadd.f32 %v738, %v1001
        %v1037 = vadd.f32 %v741, %v1004
        %s1038 = scalar_lea.vmem %s1, 96
        %v1039 = vld [vmem:[%s1038] sm:$0xff]
        %v1040 = vld [vmem:[%s1038 + $0x8] sm:$0xff]
        %v1041 = vld [vmem:[%s1038 + $0x10] sm:$0xff]
        %v1042 = vld [vmem:[%s1038 + $0x18] sm:$0xff]
        %v1044 = vsel %vm388, %v244, 0
        %v1047 = vsel %vm388, %v245, 0
        %1049 = vmatpush.msra.mxu0 0.0
        %1050 = vmatpush.msra.mxu0 0.0
        %1051 = vmatpush.msra.mxu0 0.0
        %1052 = vmatpush.msra.mxu0 0.0
        %1053 = vmatpush.msra.mxu0 0.0
        %1054 = vmatpush.msra.mxu0 0.0
        %1055 = vmatpush.msra.mxu0 0.0
        %1056 = vmatpush.msra.mxu0 0.0
        %1057 = vmatpush.msra.mxu0 0.0
        %1058 = vmatpush.msra.mxu0 0.0
        %1059 = vmatpush.msra.mxu0 0.0
        %1060 = vmatpush.msra.mxu0 0.0
        %1061 = vmatpush.msra.mxu0 %v1042
        %1062 = vmatpush.msra.mxu0 %v1041
        %1063 = vmatpush.msra.mxu0 %v1040
        %1064 = vmatpush.msra.mxu0 %v1039
        %1065 = vmatmul.f32.gmra.mxu0 %v570
        %v1066 = vpop.f32.mrf.mxu0
        %v1067 = vadd.f32 0.0, %v1066
        %1068 = vmatmul.f32.gmra.mxu0 %v572
        %v1069 = vpop.f32.mrf.mxu0
        %v1070 = vadd.f32 0.0, %v1069
        %1071 = vmatmul.f32.gmra.mxu0 %v574
        %v1072 = vpop.f32.mrf.mxu0
        %v1073 = vadd.f32 0.0, %v1072
        %1074 = vmatmul.f32.gmra.mxu0 %v576
        %v1075 = vpop.f32.mrf.mxu0
        %v1076 = vadd.f32 0.0, %v1075
        %1077 = vmatmul.f32.gmra.mxu0 %v578
        %v1078 = vpop.f32.mrf.mxu0
        %v1079 = vadd.f32 0.0, %v1078
        %1080 = vmatmul.f32.gmra.mxu0 %v580
        %v1081 = vpop.f32.mrf.mxu0
        %v1082 = vadd.f32 0.0, %v1081
        %1083 = vmatmul.f32.gmra.mxu0 %v582
        %v1084 = vpop.f32.mrf.mxu0
        %v1085 = vadd.f32 0.0, %v1084
        %1086 = vmatmul.f32.gmra.mxu0 %v584
        %v1087 = vpop.f32.mrf.mxu0
        %v1088 = vadd.f32 0.0, %v1087
        %1089 = vmatmul.f32.gmra.mxu0 %v586
        %v1090 = vpop.f32.mrf.mxu0
        %v1091 = vadd.f32 0.0, %v1090
        %1092 = vmatmul.f32.gmra.mxu0 %v588
        %v1093 = vpop.f32.mrf.mxu0
        %v1094 = vadd.f32 0.0, %v1093
        %1095 = vmatmul.f32.gmra.mxu0 %v590
        %v1096 = vpop.f32.mrf.mxu0
        %v1097 = vadd.f32 0.0, %v1096
        %1098 = vmatmul.f32.gmra.mxu0 %v592
        %v1099 = vpop.f32.mrf.mxu0
        %v1100 = vadd.f32 0.0, %v1099
        %1101 = vmatmul.f32.gmra.mxu0 %v594
        %v1102 = vpop.f32.mrf.mxu0
        %v1103 = vadd.f32 0.0, %v1102
        %1104 = vmatmul.f32.gmra.mxu0 %v596
        %v1105 = vpop.f32.mrf.mxu0
        %v1106 = vadd.f32 0.0, %v1105
        %1107 = vmatmul.f32.gmra.mxu0 %v598
        %v1108 = vpop.f32.mrf.mxu0
        %v1109 = vadd.f32 0.0, %v1108
        %1110 = vmatmul.f32.gmra.mxu0 %v600
        %v1111 = vpop.f32.mrf.mxu0
        %v1112 = vadd.f32 0.0, %v1111
        %1113 = vmatmul.f32.gmra.mxu0 %v602
        %v1114 = vpop.f32.mrf.mxu0
        %v1115 = vadd.f32 0.0, %v1114
        %1116 = vmatmul.f32.gmra.mxu0 %v604
        %v1117 = vpop.f32.mrf.mxu0
        %v1118 = vadd.f32 0.0, %v1117
        %1119 = vmatmul.f32.gmra.mxu0 %v606
        %v1120 = vpop.f32.mrf.mxu0
        %v1121 = vadd.f32 0.0, %v1120
        %1122 = vmatmul.f32.gmra.mxu0 %v608
        %v1123 = vpop.f32.mrf.mxu0
        %v1124 = vadd.f32 0.0, %v1123
        %1125 = vmatmul.f32.gmra.mxu0 %v610
        %v1126 = vpop.f32.mrf.mxu0
        %v1127 = vadd.f32 0.0, %v1126
        %1128 = vmatmul.f32.gmra.mxu0 %v612
        %v1129 = vpop.f32.mrf.mxu0
        %v1130 = vadd.f32 0.0, %v1129
        %1131 = vmatmul.f32.gmra.mxu0 %v614
        %v1132 = vpop.f32.mrf.mxu0
        %v1133 = vadd.f32 0.0, %v1132
        %1134 = vmatmul.f32.gmra.mxu0 %v616
        %v1135 = vpop.f32.mrf.mxu0
        %v1136 = vadd.f32 0.0, %v1135
        %1137 = vmatmul.f32.gmra.mxu0 %v618
        %v1138 = vpop.f32.mrf.mxu0
        %v1139 = vadd.f32 0.0, %v1138
        %1140 = vmatmul.f32.gmra.mxu0 %v620
        %v1141 = vpop.f32.mrf.mxu0
        %v1142 = vadd.f32 0.0, %v1141
        %1143 = vmatmul.f32.gmra.mxu0 %v622
        %v1144 = vpop.f32.mrf.mxu0
        %v1145 = vadd.f32 0.0, %v1144
        %1146 = vmatmul.f32.gmra.mxu0 %v624
        %v1147 = vpop.f32.mrf.mxu0
        %v1148 = vadd.f32 0.0, %v1147
        %1149 = vmatmul.f32.gmra.mxu0 %v626
        %v1150 = vpop.f32.mrf.mxu0
        %v1151 = vadd.f32 0.0, %v1150
        %1152 = vmatmul.f32.gmra.mxu0 %v628
        %v1153 = vpop.f32.mrf.mxu0
        %v1154 = vadd.f32 0.0, %v1153
        %1155 = vmatmul.f32.gmra.mxu0 %v1044
        %v1156 = vpop.f32.mrf.mxu0
        %v1157 = vadd.f32 0.0, %v1156
        %1158 = vmatmul.f32.gmra.mxu0 %v1047
        %v1159 = vpop.f32.mrf.mxu0
        %v1160 = vadd.f32 0.0, %v1159
        %1161 = vdwg.mxu0
        %v1162 = vadd.f32 %v1006, %v1067
        %v1163 = vadd.f32 %v1007, %v1070
        %v1164 = vadd.f32 %v1008, %v1073
        %v1165 = vadd.f32 %v1009, %v1076
        %v1166 = vadd.f32 %v1010, %v1079
        %v1167 = vadd.f32 %v1011, %v1082
        %v1168 = vadd.f32 %v1012, %v1085
        %v1169 = vadd.f32 %v1013, %v1088
        %v1170 = vadd.f32 %v1014, %v1091
        %v1171 = vadd.f32 %v1015, %v1094
        %v1172 = vadd.f32 %v1016, %v1097
        %v1173 = vadd.f32 %v1017, %v1100
        %v1174 = vadd.f32 %v1018, %v1103
        %v1175 = vadd.f32 %v1019, %v1106
        %v1176 = vadd.f32 %v1020, %v1109
        %v1177 = vadd.f32 %v1021, %v1112
        %v1178 = vadd.f32 %v1022, %v1115
        %v1179 = vadd.f32 %v1023, %v1118
        %v1180 = vadd.f32 %v1024, %v1121
        %v1181 = vadd.f32 %v1025, %v1124
        %v1182 = vadd.f32 %v1026, %v1127
        %v1183 = vadd.f32 %v1027, %v1130
        %v1184 = vadd.f32 %v1028, %v1133
        %v1185 = vadd.f32 %v1029, %v1136
        %v1186 = vadd.f32 %v1030, %v1139
        %v1187 = vadd.f32 %v1031, %v1142
        %v1188 = vadd.f32 %v1032, %v1145
        %v1189 = vadd.f32 %v1033, %v1148
        %v1190 = vadd.f32 %v1034, %v1151
        %v1191 = vadd.f32 %v1035, %v1154
        %v1192 = vadd.f32 %v1036, %v1157
        %v1193 = vadd.f32 %v1037, %v1160
        %v1195 = vrot.slane %v244, 1
        %v1196 = vrot.slane %v245, 1
        %v1197 = vsel %vm302, %v1195, %v1196
        %v1198 = vrot.slane %v246, 1
        %v1199 = vsel %vm302, %v1196, %v1198
        %s1200 = scalar_lea.vmem %s1, 128
        %v1201 = vld [vmem:[%s1200] sm:$0xff]
        %v1202 = vld [vmem:[%s1200 + $0x8] sm:$0xff]
        %v1203 = vld [vmem:[%s1200 + $0x10] sm:$0xff]
        %v1204 = vld [vmem:[%s1200 + $0x18] sm:$0xff]
        %v1205 = vsel %vm388, %v1197, 0
        %v1207 = vsel %vm388, %v1199, 0
        %1209 = vmatpush.msra.mxu0 0.0
        %1210 = vmatpush.msra.mxu0 0.0
        %1211 = vmatpush.msra.mxu0 0.0
        %1212 = vmatpush.msra.mxu0 0.0
        %1213 = vmatpush.msra.mxu0 0.0
        %1214 = vmatpush.msra.mxu0 0.0
        %1215 = vmatpush.msra.mxu0 0.0
        %1216 = vmatpush.msra.mxu0 0.0
        %1217 = vmatpush.msra.mxu0 0.0
        %1218 = vmatpush.msra.mxu0 0.0
        %1219 = vmatpush.msra.mxu0 0.0
        %1220 = vmatpush.msra.mxu0 0.0
        %1221 = vmatpush.msra.mxu0 %v1204
        %1222 = vmatpush.msra.mxu0 %v1203
        %1223 = vmatpush.msra.mxu0 %v1202
        %1224 = vmatpush.msra.mxu0 %v1201
        %1225 = vmatmul.f32.gmra.mxu0 %v393
        %v1226 = vpop.f32.mrf.mxu0
        %v1227 = vadd.f32 0.0, %v1226
        %1228 = vmatmul.f32.gmra.mxu0 %v395
        %v1229 = vpop.f32.mrf.mxu0
        %v1230 = vadd.f32 0.0, %v1229
        %1231 = vmatmul.f32.gmra.mxu0 %v397
        %v1232 = vpop.f32.mrf.mxu0
        %v1233 = vadd.f32 0.0, %v1232
        %1234 = vmatmul.f32.gmra.mxu0 %v399
        %v1235 = vpop.f32.mrf.mxu0
        %v1236 = vadd.f32 0.0, %v1235
        %1237 = vmatmul.f32.gmra.mxu0 %v401
        %v1238 = vpop.f32.mrf.mxu0
        %v1239 = vadd.f32 0.0, %v1238
        %1240 = vmatmul.f32.gmra.mxu0 %v403
        %v1241 = vpop.f32.mrf.mxu0
        %v1242 = vadd.f32 0.0, %v1241
        %1243 = vmatmul.f32.gmra.mxu0 %v405
        %v1244 = vpop.f32.mrf.mxu0
        %v1245 = vadd.f32 0.0, %v1244
        %1246 = vmatmul.f32.gmra.mxu0 %v407
        %v1247 = vpop.f32.mrf.mxu0
        %v1248 = vadd.f32 0.0, %v1247
        %1249 = vmatmul.f32.gmra.mxu0 %v409
        %v1250 = vpop.f32.mrf.mxu0
        %v1251 = vadd.f32 0.0, %v1250
        %1252 = vmatmul.f32.gmra.mxu0 %v411
        %v1253 = vpop.f32.mrf.mxu0
        %v1254 = vadd.f32 0.0, %v1253
        %1255 = vmatmul.f32.gmra.mxu0 %v413
        %v1256 = vpop.f32.mrf.mxu0
        %v1257 = vadd.f32 0.0, %v1256
        %1258 = vmatmul.f32.gmra.mxu0 %v415
        %v1259 = vpop.f32.mrf.mxu0
        %v1260 = vadd.f32 0.0, %v1259
        %1261 = vmatmul.f32.gmra.mxu0 %v417
        %v1262 = vpop.f32.mrf.mxu0
        %v1263 = vadd.f32 0.0, %v1262
        %1264 = vmatmul.f32.gmra.mxu0 %v419
        %v1265 = vpop.f32.mrf.mxu0
        %v1266 = vadd.f32 0.0, %v1265
        %1267 = vmatmul.f32.gmra.mxu0 %v421
        %v1268 = vpop.f32.mrf.mxu0
        %v1269 = vadd.f32 0.0, %v1268
        %1270 = vmatmul.f32.gmra.mxu0 %v423
        %v1271 = vpop.f32.mrf.mxu0
        %v1272 = vadd.f32 0.0, %v1271
        %1273 = vmatmul.f32.gmra.mxu0 %v425
        %v1274 = vpop.f32.mrf.mxu0
        %v1275 = vadd.f32 0.0, %v1274
        %1276 = vmatmul.f32.gmra.mxu0 %v427
        %v1277 = vpop.f32.mrf.mxu0
        %v1278 = vadd.f32 0.0, %v1277
        %1279 = vmatmul.f32.gmra.mxu0 %v429
        %v1280 = vpop.f32.mrf.mxu0
        %v1281 = vadd.f32 0.0, %v1280
        %1282 = vmatmul.f32.gmra.mxu0 %v431
        %v1283 = vpop.f32.mrf.mxu0
        %v1284 = vadd.f32 0.0, %v1283
        %1285 = vmatmul.f32.gmra.mxu0 %v433
        %v1286 = vpop.f32.mrf.mxu0
        %v1287 = vadd.f32 0.0, %v1286
        %1288 = vmatmul.f32.gmra.mxu0 %v435
        %v1289 = vpop.f32.mrf.mxu0
        %v1290 = vadd.f32 0.0, %v1289
        %1291 = vmatmul.f32.gmra.mxu0 %v437
        %v1292 = vpop.f32.mrf.mxu0
        %v1293 = vadd.f32 0.0, %v1292
        %1294 = vmatmul.f32.gmra.mxu0 %v439
        %v1295 = vpop.f32.mrf.mxu0
        %v1296 = vadd.f32 0.0, %v1295
        %1297 = vmatmul.f32.gmra.mxu0 %v441
        %v1298 = vpop.f32.mrf.mxu0
        %v1299 = vadd.f32 0.0, %v1298
        %1300 = vmatmul.f32.gmra.mxu0 %v443
        %v1301 = vpop.f32.mrf.mxu0
        %v1302 = vadd.f32 0.0, %v1301
        %1303 = vmatmul.f32.gmra.mxu0 %v445
        %v1304 = vpop.f32.mrf.mxu0
        %v1305 = vadd.f32 0.0, %v1304
        %1306 = vmatmul.f32.gmra.mxu0 %v447
        %v1307 = vpop.f32.mrf.mxu0
        %v1308 = vadd.f32 0.0, %v1307
        %1309 = vmatmul.f32.gmra.mxu0 %v449
        %v1310 = vpop.f32.mrf.mxu0
        %v1311 = vadd.f32 0.0, %v1310
        %1312 = vmatmul.f32.gmra.mxu0 %v451
        %v1313 = vpop.f32.mrf.mxu0
        %v1314 = vadd.f32 0.0, %v1313
        %1315 = vmatmul.f32.gmra.mxu0 %v1205
        %v1316 = vpop.f32.mrf.mxu0
        %v1317 = vadd.f32 0.0, %v1316
        %1318 = vmatmul.f32.gmra.mxu0 %v1207
        %v1319 = vpop.f32.mrf.mxu0
        %v1320 = vadd.f32 0.0, %v1319
        %1321 = vdwg.mxu0
        %v1322 = vadd.f32 %v1162, %v1227
        %v1323 = vadd.f32 %v1163, %v1230
        %v1324 = vadd.f32 %v1164, %v1233
        %v1325 = vadd.f32 %v1165, %v1236
        %v1326 = vadd.f32 %v1166, %v1239
        %v1327 = vadd.f32 %v1167, %v1242
        %v1328 = vadd.f32 %v1168, %v1245
        %v1329 = vadd.f32 %v1169, %v1248
        %v1330 = vadd.f32 %v1170, %v1251
        %v1331 = vadd.f32 %v1171, %v1254
        %v1332 = vadd.f32 %v1172, %v1257
        %v1333 = vadd.f32 %v1173, %v1260
        %v1334 = vadd.f32 %v1174, %v1263
        %v1335 = vadd.f32 %v1175, %v1266
        %v1336 = vadd.f32 %v1176, %v1269
        %v1337 = vadd.f32 %v1177, %v1272
        %v1338 = vadd.f32 %v1178, %v1275
        %v1339 = vadd.f32 %v1179, %v1278
        %v1340 = vadd.f32 %v1180, %v1281
        %v1341 = vadd.f32 %v1181, %v1284
        %v1342 = vadd.f32 %v1182, %v1287
        %v1343 = vadd.f32 %v1183, %v1290
        %v1344 = vadd.f32 %v1184, %v1293
        %v1345 = vadd.f32 %v1185, %v1296
        %v1346 = vadd.f32 %v1186, %v1299
        %v1347 = vadd.f32 %v1187, %v1302
        %v1348 = vadd.f32 %v1188, %v1305
        %v1349 = vadd.f32 %v1189, %v1308
        %v1350 = vadd.f32 %v1190, %v1311
        %v1351 = vadd.f32 %v1191, %v1314
        %v1352 = vadd.f32 %v1192, %v1317
        %v1353 = vadd.f32 %v1193, %v1320
        %v1354 = vrot.slane %v244, 2
        %v1355 = vrot.slane %v245, 2
        %v1356 = vsel %vm743, %v1354, %v1355
        %v1357 = vrot.slane %v246, 2
        %v1358 = vsel %vm743, %v1355, %v1357
        %s1359 = scalar_lea.vmem %s1, 160
        %v1360 = vld [vmem:[%s1359] sm:$0xff]
        %v1361 = vld [vmem:[%s1359 + $0x8] sm:$0xff]
        %v1362 = vld [vmem:[%s1359 + $0x10] sm:$0xff]
        %v1363 = vld [vmem:[%s1359 + $0x18] sm:$0xff]
        %v1364 = vsel %vm388, %v1356, 0
        %v1366 = vsel %vm388, %v1358, 0
        %1368 = vmatpush.msra.mxu0 0.0
        %1369 = vmatpush.msra.mxu0 0.0
        %1370 = vmatpush.msra.mxu0 0.0
        %1371 = vmatpush.msra.mxu0 0.0
        %1372 = vmatpush.msra.mxu0 0.0
        %1373 = vmatpush.msra.mxu0 0.0
        %1374 = vmatpush.msra.mxu0 0.0
        %1375 = vmatpush.msra.mxu0 0.0
        %1376 = vmatpush.msra.mxu0 0.0
        %1377 = vmatpush.msra.mxu0 0.0
        %1378 = vmatpush.msra.mxu0 0.0
        %1379 = vmatpush.msra.mxu0 0.0
        %1380 = vmatpush.msra.mxu0 %v1363
        %1381 = vmatpush.msra.mxu0 %v1362
        %1382 = vmatpush.msra.mxu0 %v1361
        %1383 = vmatpush.msra.mxu0 %v1360
        %1384 = vmatmul.f32.gmra.mxu0 %v833
        %v1385 = vpop.f32.mrf.mxu0
        %v1386 = vadd.f32 0.0, %v1385
        %1387 = vmatmul.f32.gmra.mxu0 %v835
        %v1388 = vpop.f32.mrf.mxu0
        %v1389 = vadd.f32 0.0, %v1388
        %1390 = vmatmul.f32.gmra.mxu0 %v837
        %v1391 = vpop.f32.mrf.mxu0
        %v1392 = vadd.f32 0.0, %v1391
        %1393 = vmatmul.f32.gmra.mxu0 %v839
        %v1394 = vpop.f32.mrf.mxu0
        %v1395 = vadd.f32 0.0, %v1394
        %1396 = vmatmul.f32.gmra.mxu0 %v841
        %v1397 = vpop.f32.mrf.mxu0
        %v1398 = vadd.f32 0.0, %v1397
        %1399 = vmatmul.f32.gmra.mxu0 %v843
        %v1400 = vpop.f32.mrf.mxu0
        %v1401 = vadd.f32 0.0, %v1400
        %1402 = vmatmul.f32.gmra.mxu0 %v845
        %v1403 = vpop.f32.mrf.mxu0
        %v1404 = vadd.f32 0.0, %v1403
        %1405 = vmatmul.f32.gmra.mxu0 %v847
        %v1406 = vpop.f32.mrf.mxu0
        %v1407 = vadd.f32 0.0, %v1406
        %1408 = vmatmul.f32.gmra.mxu0 %v849
        %v1409 = vpop.f32.mrf.mxu0
        %v1410 = vadd.f32 0.0, %v1409
        %1411 = vmatmul.f32.gmra.mxu0 %v851
        %v1412 = vpop.f32.mrf.mxu0
        %v1413 = vadd.f32 0.0, %v1412
        %1414 = vmatmul.f32.gmra.mxu0 %v853
        %v1415 = vpop.f32.mrf.mxu0
        %v1416 = vadd.f32 0.0, %v1415
        %1417 = vmatmul.f32.gmra.mxu0 %v855
        %v1418 = vpop.f32.mrf.mxu0
        %v1419 = vadd.f32 0.0, %v1418
        %1420 = vmatmul.f32.gmra.mxu0 %v857
        %v1421 = vpop.f32.mrf.mxu0
        %v1422 = vadd.f32 0.0, %v1421
        %1423 = vmatmul.f32.gmra.mxu0 %v859
        %v1424 = vpop.f32.mrf.mxu0
        %v1425 = vadd.f32 0.0, %v1424
        %1426 = vmatmul.f32.gmra.mxu0 %v861
        %v1427 = vpop.f32.mrf.mxu0
        %v1428 = vadd.f32 0.0, %v1427
        %1429 = vmatmul.f32.gmra.mxu0 %v863
        %v1430 = vpop.f32.mrf.mxu0
        %v1431 = vadd.f32 0.0, %v1430
        %1432 = vmatmul.f32.gmra.mxu0 %v865
        %v1433 = vpop.f32.mrf.mxu0
        %v1434 = vadd.f32 0.0, %v1433
        %1435 = vmatmul.f32.gmra.mxu0 %v867
        %v1436 = vpop.f32.mrf.mxu0
        %v1437 = vadd.f32 0.0, %v1436
        %1438 = vmatmul.f32.gmra.mxu0 %v869
        %v1439 = vpop.f32.mrf.mxu0
        %v1440 = vadd.f32 0.0, %v1439
        %1441 = vmatmul.f32.gmra.mxu0 %v871
        %v1442 = vpop.f32.mrf.mxu0
        %v1443 = vadd.f32 0.0, %v1442
        %1444 = vmatmul.f32.gmra.mxu0 %v873
        %v1445 = vpop.f32.mrf.mxu0
        %v1446 = vadd.f32 0.0, %v1445
        %1447 = vmatmul.f32.gmra.mxu0 %v875
        %v1448 = vpop.f32.mrf.mxu0
        %v1449 = vadd.f32 0.0, %v1448
        %1450 = vmatmul.f32.gmra.mxu0 %v877
        %v1451 = vpop.f32.mrf.mxu0
        %v1452 = vadd.f32 0.0, %v1451
        %1453 = vmatmul.f32.gmra.mxu0 %v879
        %v1454 = vpop.f32.mrf.mxu0
        %v1455 = vadd.f32 0.0, %v1454
        %1456 = vmatmul.f32.gmra.mxu0 %v881
        %v1457 = vpop.f32.mrf.mxu0
        %v1458 = vadd.f32 0.0, %v1457
        %1459 = vmatmul.f32.gmra.mxu0 %v883
        %v1460 = vpop.f32.mrf.mxu0
        %v1461 = vadd.f32 0.0, %v1460
        %1462 = vmatmul.f32.gmra.mxu0 %v885
        %v1463 = vpop.f32.mrf.mxu0
        %v1464 = vadd.f32 0.0, %v1463
        %1465 = vmatmul.f32.gmra.mxu0 %v887
        %v1466 = vpop.f32.mrf.mxu0
        %v1467 = vadd.f32 0.0, %v1466
        %1468 = vmatmul.f32.gmra.mxu0 %v889
        %v1469 = vpop.f32.mrf.mxu0
        %v1470 = vadd.f32 0.0, %v1469
        %1471 = vmatmul.f32.gmra.mxu0 %v891
        %v1472 = vpop.f32.mrf.mxu0
        %v1473 = vadd.f32 0.0, %v1472
        %1474 = vmatmul.f32.gmra.mxu0 %v1364
        %v1475 = vpop.f32.mrf.mxu0
        %v1476 = vadd.f32 0.0, %v1475
        %1477 = vmatmul.f32.gmra.mxu0 %v1366
        %v1478 = vpop.f32.mrf.mxu0
        %v1479 = vadd.f32 0.0, %v1478
        %1480 = vdwg.mxu0
        %v1481 = vadd.f32 %v1322, %v1386
        %v1482 = vadd.f32 %v1323, %v1389
        %v1483 = vadd.f32 %v1324, %v1392
        %v1484 = vadd.f32 %v1325, %v1395
        %v1485 = vadd.f32 %v1326, %v1398
        %v1486 = vadd.f32 %v1327, %v1401
        %v1487 = vadd.f32 %v1328, %v1404
        %v1488 = vadd.f32 %v1329, %v1407
        %v1489 = vadd.f32 %v1330, %v1410
        %v1490 = vadd.f32 %v1331, %v1413
        %v1491 = vadd.f32 %v1332, %v1416
        %v1492 = vadd.f32 %v1333, %v1419
        %v1493 = vadd.f32 %v1334, %v1422
        %v1494 = vadd.f32 %v1335, %v1425
        %v1495 = vadd.f32 %v1336, %v1428
        %v1496 = vadd.f32 %v1337, %v1431
        %v1497 = vadd.f32 %v1338, %v1434
        %v1498 = vadd.f32 %v1339, %v1437
        %v1499 = vadd.f32 %v1340, %v1440
        %v1500 = vadd.f32 %v1341, %v1443
        %v1501 = vadd.f32 %v1342, %v1446
        %v1502 = vadd.f32 %v1343, %v1449
        %v1503 = vadd.f32 %v1344, %v1452
        %v1504 = vadd.f32 %v1345, %v1455
        %v1505 = vadd.f32 %v1346, %v1458
        %v1506 = vadd.f32 %v1347, %v1461
        %v1507 = vadd.f32 %v1348, %v1464
        %v1508 = vadd.f32 %v1349, %v1467
        %v1509 = vadd.f32 %v1350, %v1470
        %v1510 = vadd.f32 %v1351, %v1473
        %v1511 = vadd.f32 %v1352, %v1476
        %v1512 = vadd.f32 %v1353, %v1479
        %s1513 = scalar_lea.vmem %s1, 192
        %v1514 = vld [vmem:[%s1513] sm:$0xff]
        %v1515 = vld [vmem:[%s1513 + $0x8] sm:$0xff]
        %v1516 = vld [vmem:[%s1513 + $0x10] sm:$0xff]
        %v1517 = vld [vmem:[%s1513 + $0x18] sm:$0xff]
        %v1519 = vsel %vm388, %v247, 0
        %v1522 = vsel %vm388, %v248, 0
        %1524 = vmatpush.msra.mxu0 0.0
        %1525 = vmatpush.msra.mxu0 0.0
        %1526 = vmatpush.msra.mxu0 0.0
        %1527 = vmatpush.msra.mxu0 0.0
        %1528 = vmatpush.msra.mxu0 0.0
        %1529 = vmatpush.msra.mxu0 0.0
        %1530 = vmatpush.msra.mxu0 0.0
        %1531 = vmatpush.msra.mxu0 0.0
        %1532 = vmatpush.msra.mxu0 0.0
        %1533 = vmatpush.msra.mxu0 0.0
        %1534 = vmatpush.msra.mxu0 0.0
        %1535 = vmatpush.msra.mxu0 0.0
        %1536 = vmatpush.msra.mxu0 %v1517
        %1537 = vmatpush.msra.mxu0 %v1516
        %1538 = vmatpush.msra.mxu0 %v1515
        %1539 = vmatpush.msra.mxu0 %v1514
        %1540 = vmatmul.f32.gmra.mxu0 %v574
        %v1541 = vpop.f32.mrf.mxu0
        %v1542 = vadd.f32 0.0, %v1541
        %1543 = vmatmul.f32.gmra.mxu0 %v576
        %v1544 = vpop.f32.mrf.mxu0
        %v1545 = vadd.f32 0.0, %v1544
        %1546 = vmatmul.f32.gmra.mxu0 %v578
        %v1547 = vpop.f32.mrf.mxu0
        %v1548 = vadd.f32 0.0, %v1547
        %1549 = vmatmul.f32.gmra.mxu0 %v580
        %v1550 = vpop.f32.mrf.mxu0
        %v1551 = vadd.f32 0.0, %v1550
        %1552 = vmatmul.f32.gmra.mxu0 %v582
        %v1553 = vpop.f32.mrf.mxu0
        %v1554 = vadd.f32 0.0, %v1553
        %1555 = vmatmul.f32.gmra.mxu0 %v584
        %v1556 = vpop.f32.mrf.mxu0
        %v1557 = vadd.f32 0.0, %v1556
        %1558 = vmatmul.f32.gmra.mxu0 %v586
        %v1559 = vpop.f32.mrf.mxu0
        %v1560 = vadd.f32 0.0, %v1559
        %1561 = vmatmul.f32.gmra.mxu0 %v588
        %v1562 = vpop.f32.mrf.mxu0
        %v1563 = vadd.f32 0.0, %v1562
        %1564 = vmatmul.f32.gmra.mxu0 %v590
        %v1565 = vpop.f32.mrf.mxu0
        %v1566 = vadd.f32 0.0, %v1565
        %1567 = vmatmul.f32.gmra.mxu0 %v592
        %v1568 = vpop.f32.mrf.mxu0
        %v1569 = vadd.f32 0.0, %v1568
        %1570 = vmatmul.f32.gmra.mxu0 %v594
        %v1571 = vpop.f32.mrf.mxu0
        %v1572 = vadd.f32 0.0, %v1571
        %1573 = vmatmul.f32.gmra.mxu0 %v596
        %v1574 = vpop.f32.mrf.mxu0
        %v1575 = vadd.f32 0.0, %v1574
        %1576 = vmatmul.f32.gmra.mxu0 %v598
        %v1577 = vpop.f32.mrf.mxu0
        %v1578 = vadd.f32 0.0, %v1577
        %1579 = vmatmul.f32.gmra.mxu0 %v600
        %v1580 = vpop.f32.mrf.mxu0
        %v1581 = vadd.f32 0.0, %v1580
        %1582 = vmatmul.f32.gmra.mxu0 %v602
        %v1583 = vpop.f32.mrf.mxu0
        %v1584 = vadd.f32 0.0, %v1583
        %1585 = vmatmul.f32.gmra.mxu0 %v604
        %v1586 = vpop.f32.mrf.mxu0
        %v1587 = vadd.f32 0.0, %v1586
        %1588 = vmatmul.f32.gmra.mxu0 %v606
        %v1589 = vpop.f32.mrf.mxu0
        %v1590 = vadd.f32 0.0, %v1589
        %1591 = vmatmul.f32.gmra.mxu0 %v608
        %v1592 = vpop.f32.mrf.mxu0
        %v1593 = vadd.f32 0.0, %v1592
        %1594 = vmatmul.f32.gmra.mxu0 %v610
        %v1595 = vpop.f32.mrf.mxu0
        %v1596 = vadd.f32 0.0, %v1595
        %1597 = vmatmul.f32.gmra.mxu0 %v612
        %v1598 = vpop.f32.mrf.mxu0
        %v1599 = vadd.f32 0.0, %v1598
        %1600 = vmatmul.f32.gmra.mxu0 %v614
        %v1601 = vpop.f32.mrf.mxu0
        %v1602 = vadd.f32 0.0, %v1601
        %1603 = vmatmul.f32.gmra.mxu0 %v616
        %v1604 = vpop.f32.mrf.mxu0
        %v1605 = vadd.f32 0.0, %v1604
        %1606 = vmatmul.f32.gmra.mxu0 %v618
        %v1607 = vpop.f32.mrf.mxu0
        %v1608 = vadd.f32 0.0, %v1607
        %1609 = vmatmul.f32.gmra.mxu0 %v620
        %v1610 = vpop.f32.mrf.mxu0
        %v1611 = vadd.f32 0.0, %v1610
        %1612 = vmatmul.f32.gmra.mxu0 %v622
        %v1613 = vpop.f32.mrf.mxu0
        %v1614 = vadd.f32 0.0, %v1613
        %1615 = vmatmul.f32.gmra.mxu0 %v624
        %v1616 = vpop.f32.mrf.mxu0
        %v1617 = vadd.f32 0.0, %v1616
        %1618 = vmatmul.f32.gmra.mxu0 %v626
        %v1619 = vpop.f32.mrf.mxu0
        %v1620 = vadd.f32 0.0, %v1619
        %1621 = vmatmul.f32.gmra.mxu0 %v628
        %v1622 = vpop.f32.mrf.mxu0
        %v1623 = vadd.f32 0.0, %v1622
        %1624 = vmatmul.f32.gmra.mxu0 %v1044
        %v1625 = vpop.f32.mrf.mxu0
        %v1626 = vadd.f32 0.0, %v1625
        %1627 = vmatmul.f32.gmra.mxu0 %v1047
        %v1628 = vpop.f32.mrf.mxu0
        %v1629 = vadd.f32 0.0, %v1628
        %1630 = vmatmul.f32.gmra.mxu0 %v1519
        %v1631 = vpop.f32.mrf.mxu0
        %v1632 = vadd.f32 0.0, %v1631
        %1633 = vmatmul.f32.gmra.mxu0 %v1522
        %v1634 = vpop.f32.mrf.mxu0
        %v1635 = vadd.f32 0.0, %v1634
        %1636 = vdwg.mxu0
        %v1637 = vadd.f32 %v1481, %v1542
        %v1638 = vadd.f32 %v1482, %v1545
        %v1639 = vadd.f32 %v1483, %v1548
        %v1640 = vadd.f32 %v1484, %v1551
        %v1641 = vadd.f32 %v1485, %v1554
        %v1642 = vadd.f32 %v1486, %v1557
        %v1643 = vadd.f32 %v1487, %v1560
        %v1644 = vadd.f32 %v1488, %v1563
        %v1645 = vadd.f32 %v1489, %v1566
        %v1646 = vadd.f32 %v1490, %v1569
        %v1647 = vadd.f32 %v1491, %v1572
        %v1648 = vadd.f32 %v1492, %v1575
        %v1649 = vadd.f32 %v1493, %v1578
        %v1650 = vadd.f32 %v1494, %v1581
        %v1651 = vadd.f32 %v1495, %v1584
        %v1652 = vadd.f32 %v1496, %v1587
        %v1653 = vadd.f32 %v1497, %v1590
        %v1654 = vadd.f32 %v1498, %v1593
        %v1655 = vadd.f32 %v1499, %v1596
        %v1656 = vadd.f32 %v1500, %v1599
        %v1657 = vadd.f32 %v1501, %v1602
        %v1658 = vadd.f32 %v1502, %v1605
        %v1659 = vadd.f32 %v1503, %v1608
        %v1660 = vadd.f32 %v1504, %v1611
        %v1661 = vadd.f32 %v1505, %v1614
        %v1662 = vadd.f32 %v1506, %v1617
        %v1663 = vadd.f32 %v1507, %v1620
        %v1664 = vadd.f32 %v1508, %v1623
        %v1665 = vadd.f32 %v1509, %v1626
        %v1666 = vadd.f32 %v1510, %v1629
        %v1667 = vadd.f32 %v1511, %v1632
        %v1668 = vadd.f32 %v1512, %v1635
        %v1670 = vrot.slane %v247, 1
        %v1671 = vrot.slane %v248, 1
        %v1672 = vsel %vm302, %v1670, %v1671
        %v1673 = vrot.slane %v249, 1
        %v1674 = vsel %vm302, %v1671, %v1673
        %s1675 = scalar_lea.vmem %s1, 224
        %v1676 = vld [vmem:[%s1675] sm:$0xff]
        %v1677 = vld [vmem:[%s1675 + $0x8] sm:$0xff]
        %v1678 = vld [vmem:[%s1675 + $0x10] sm:$0xff]
        %v1679 = vld [vmem:[%s1675 + $0x18] sm:$0xff]
        %v1680 = vsel %vm388, %v1672, 0
        %v1682 = vsel %vm388, %v1674, 0
        %1684 = vmatpush.msra.mxu0 0.0
        %1685 = vmatpush.msra.mxu0 0.0
        %1686 = vmatpush.msra.mxu0 0.0
        %1687 = vmatpush.msra.mxu0 0.0
        %1688 = vmatpush.msra.mxu0 0.0
        %1689 = vmatpush.msra.mxu0 0.0
        %1690 = vmatpush.msra.mxu0 0.0
        %1691 = vmatpush.msra.mxu0 0.0
        %1692 = vmatpush.msra.mxu0 0.0
        %1693 = vmatpush.msra.mxu0 0.0
        %1694 = vmatpush.msra.mxu0 0.0
        %1695 = vmatpush.msra.mxu0 0.0
        %1696 = vmatpush.msra.mxu0 %v1679
        %1697 = vmatpush.msra.mxu0 %v1678
        %1698 = vmatpush.msra.mxu0 %v1677
        %1699 = vmatpush.msra.mxu0 %v1676
        %1700 = vmatmul.f32.gmra.mxu0 %v397
        %v1701 = vpop.f32.mrf.mxu0
        %v1702 = vadd.f32 0.0, %v1701
        %1703 = vmatmul.f32.gmra.mxu0 %v399
        %v1704 = vpop.f32.mrf.mxu0
        %v1705 = vadd.f32 0.0, %v1704
        %1706 = vmatmul.f32.gmra.mxu0 %v401
        %v1707 = vpop.f32.mrf.mxu0
        %v1708 = vadd.f32 0.0, %v1707
        %1709 = vmatmul.f32.gmra.mxu0 %v403
        %v1710 = vpop.f32.mrf.mxu0
        %v1711 = vadd.f32 0.0, %v1710
        %1712 = vmatmul.f32.gmra.mxu0 %v405
        %v1713 = vpop.f32.mrf.mxu0
        %v1714 = vadd.f32 0.0, %v1713
        %1715 = vmatmul.f32.gmra.mxu0 %v407
        %v1716 = vpop.f32.mrf.mxu0
        %v1717 = vadd.f32 0.0, %v1716
        %1718 = vmatmul.f32.gmra.mxu0 %v409
        %v1719 = vpop.f32.mrf.mxu0
        %v1720 = vadd.f32 0.0, %v1719
        %1721 = vmatmul.f32.gmra.mxu0 %v411
        %v1722 = vpop.f32.mrf.mxu0
        %v1723 = vadd.f32 0.0, %v1722
        %1724 = vmatmul.f32.gmra.mxu0 %v413
        %v1725 = vpop.f32.mrf.mxu0
        %v1726 = vadd.f32 0.0, %v1725
        %1727 = vmatmul.f32.gmra.mxu0 %v415
        %v1728 = vpop.f32.mrf.mxu0
        %v1729 = vadd.f32 0.0, %v1728
        %1730 = vmatmul.f32.gmra.mxu0 %v417
        %v1731 = vpop.f32.mrf.mxu0
        %v1732 = vadd.f32 0.0, %v1731
        %1733 = vmatmul.f32.gmra.mxu0 %v419
        %v1734 = vpop.f32.mrf.mxu0
        %v1735 = vadd.f32 0.0, %v1734
        %1736 = vmatmul.f32.gmra.mxu0 %v421
        %v1737 = vpop.f32.mrf.mxu0
        %v1738 = vadd.f32 0.0, %v1737
        %1739 = vmatmul.f32.gmra.mxu0 %v423
        %v1740 = vpop.f32.mrf.mxu0
        %v1741 = vadd.f32 0.0, %v1740
        %1742 = vmatmul.f32.gmra.mxu0 %v425
        %v1743 = vpop.f32.mrf.mxu0
        %v1744 = vadd.f32 0.0, %v1743
        %1745 = vmatmul.f32.gmra.mxu0 %v427
        %v1746 = vpop.f32.mrf.mxu0
        %v1747 = vadd.f32 0.0, %v1746
        %1748 = vmatmul.f32.gmra.mxu0 %v429
        %v1749 = vpop.f32.mrf.mxu0
        %v1750 = vadd.f32 0.0, %v1749
        %1751 = vmatmul.f32.gmra.mxu0 %v431
        %v1752 = vpop.f32.mrf.mxu0
        %v1753 = vadd.f32 0.0, %v1752
        %1754 = vmatmul.f32.gmra.mxu0 %v433
        %v1755 = vpop.f32.mrf.mxu0
        %v1756 = vadd.f32 0.0, %v1755
        %1757 = vmatmul.f32.gmra.mxu0 %v435
        %v1758 = vpop.f32.mrf.mxu0
        %v1759 = vadd.f32 0.0, %v1758
        %1760 = vmatmul.f32.gmra.mxu0 %v437
        %v1761 = vpop.f32.mrf.mxu0
        %v1762 = vadd.f32 0.0, %v1761
        %1763 = vmatmul.f32.gmra.mxu0 %v439
        %v1764 = vpop.f32.mrf.mxu0
        %v1765 = vadd.f32 0.0, %v1764
        %1766 = vmatmul.f32.gmra.mxu0 %v441
        %v1767 = vpop.f32.mrf.mxu0
        %v1768 = vadd.f32 0.0, %v1767
        %1769 = vmatmul.f32.gmra.mxu0 %v443
        %v1770 = vpop.f32.mrf.mxu0
        %v1771 = vadd.f32 0.0, %v1770
        %1772 = vmatmul.f32.gmra.mxu0 %v445
        %v1773 = vpop.f32.mrf.mxu0
        %v1774 = vadd.f32 0.0, %v1773
        %1775 = vmatmul.f32.gmra.mxu0 %v447
        %v1776 = vpop.f32.mrf.mxu0
        %v1777 = vadd.f32 0.0, %v1776
        %1778 = vmatmul.f32.gmra.mxu0 %v449
        %v1779 = vpop.f32.mrf.mxu0
        %v1780 = vadd.f32 0.0, %v1779
        %1781 = vmatmul.f32.gmra.mxu0 %v451
        %v1782 = vpop.f32.mrf.mxu0
        %v1783 = vadd.f32 0.0, %v1782
        %1784 = vmatmul.f32.gmra.mxu0 %v1205
        %v1785 = vpop.f32.mrf.mxu0
        %v1786 = vadd.f32 0.0, %v1785
        %1787 = vmatmul.f32.gmra.mxu0 %v1207
        %v1788 = vpop.f32.mrf.mxu0
        %v1789 = vadd.f32 0.0, %v1788
        %1790 = vmatmul.f32.gmra.mxu0 %v1680
        %v1791 = vpop.f32.mrf.mxu0
        %v1792 = vadd.f32 0.0, %v1791
        %1793 = vmatmul.f32.gmra.mxu0 %v1682
        %v1794 = vpop.f32.mrf.mxu0
        %v1795 = vadd.f32 0.0, %v1794
        %1796 = vdwg.mxu0
        %v1797 = vadd.f32 %v1637, %v1702
        %v1798 = vadd.f32 %v1638, %v1705
        %v1799 = vadd.f32 %v1639, %v1708
        %v1800 = vadd.f32 %v1640, %v1711
        %v1801 = vadd.f32 %v1641, %v1714
        %v1802 = vadd.f32 %v1642, %v1717
        %v1803 = vadd.f32 %v1643, %v1720
        %v1804 = vadd.f32 %v1644, %v1723
        %v1805 = vadd.f32 %v1645, %v1726
        %v1806 = vadd.f32 %v1646, %v1729
        %v1807 = vadd.f32 %v1647, %v1732
        %v1808 = vadd.f32 %v1648, %v1735
        %v1809 = vadd.f32 %v1649, %v1738
        %v1810 = vadd.f32 %v1650, %v1741
        %v1811 = vadd.f32 %v1651, %v1744
        %v1812 = vadd.f32 %v1652, %v1747
        %v1813 = vadd.f32 %v1653, %v1750
        %v1814 = vadd.f32 %v1654, %v1753
        %v1815 = vadd.f32 %v1655, %v1756
        %v1816 = vadd.f32 %v1656, %v1759
        %v1817 = vadd.f32 %v1657, %v1762
        %v1818 = vadd.f32 %v1658, %v1765
        %v1819 = vadd.f32 %v1659, %v1768
        %v1820 = vadd.f32 %v1660, %v1771
        %v1821 = vadd.f32 %v1661, %v1774
        %v1822 = vadd.f32 %v1662, %v1777
        %v1823 = vadd.f32 %v1663, %v1780
        %v1824 = vadd.f32 %v1664, %v1783
        %v1825 = vadd.f32 %v1665, %v1786
        %v1826 = vadd.f32 %v1666, %v1789
        %v1827 = vadd.f32 %v1667, %v1792
        %v1828 = vadd.f32 %v1668, %v1795
        %v1829 = vrot.slane %v247, 2
        %v1830 = vrot.slane %v248, 2
        %v1831 = vsel %vm743, %v1829, %v1830
        %v1832 = vrot.slane %v249, 2
        %v1833 = vsel %vm743, %v1830, %v1832
        %s1834 = scalar_lea.vmem %s1, 256
        %v1835 = vld [vmem:[%s1834] sm:$0xff]
        %v1836 = vld [vmem:[%s1834 + $0x8] sm:$0xff]
        %v1837 = vld [vmem:[%s1834 + $0x10] sm:$0xff]
        %v1838 = vld [vmem:[%s1834 + $0x18] sm:$0xff]
        %v1839 = vsel %vm388, %v1831, 0
        %v1841 = vsel %vm388, %v1833, 0
        %1843 = vmatpush.msra.mxu0 0.0
        %1844 = vmatpush.msra.mxu0 0.0
        %1845 = vmatpush.msra.mxu0 0.0
        %1846 = vmatpush.msra.mxu0 0.0
        %1847 = vmatpush.msra.mxu0 0.0
        %1848 = vmatpush.msra.mxu0 0.0
        %1849 = vmatpush.msra.mxu0 0.0
        %1850 = vmatpush.msra.mxu0 0.0
        %1851 = vmatpush.msra.mxu0 0.0
        %1852 = vmatpush.msra.mxu0 0.0
        %1853 = vmatpush.msra.mxu0 0.0
        %1854 = vmatpush.msra.mxu0 0.0
        %1855 = vmatpush.msra.mxu0 %v1838
        %1856 = vmatpush.msra.mxu0 %v1837
        %1857 = vmatpush.msra.mxu0 %v1836
        %1858 = vmatpush.msra.mxu0 %v1835
        %1859 = vmatmul.f32.gmra.mxu0 %v837
        %v1860 = vpop.f32.mrf.mxu0
        %v1861 = vadd.f32 0.0, %v1860
        %1862 = vmatmul.f32.gmra.mxu0 %v839
        %v1863 = vpop.f32.mrf.mxu0
        %v1864 = vadd.f32 0.0, %v1863
        %1865 = vmatmul.f32.gmra.mxu0 %v841
        %v1866 = vpop.f32.mrf.mxu0
        %v1867 = vadd.f32 0.0, %v1866
        %1868 = vmatmul.f32.gmra.mxu0 %v843
        %v1869 = vpop.f32.mrf.mxu0
        %v1870 = vadd.f32 0.0, %v1869
        %1871 = vmatmul.f32.gmra.mxu0 %v845
        %v1872 = vpop.f32.mrf.mxu0
        %v1873 = vadd.f32 0.0, %v1872
        %1874 = vmatmul.f32.gmra.mxu0 %v847
        %v1875 = vpop.f32.mrf.mxu0
        %v1876 = vadd.f32 0.0, %v1875
        %1877 = vmatmul.f32.gmra.mxu0 %v849
        %v1878 = vpop.f32.mrf.mxu0
        %v1879 = vadd.f32 0.0, %v1878
        %1880 = vmatmul.f32.gmra.mxu0 %v851
        %v1881 = vpop.f32.mrf.mxu0
        %v1882 = vadd.f32 0.0, %v1881
        %1883 = vmatmul.f32.gmra.mxu0 %v853
        %v1884 = vpop.f32.mrf.mxu0
        %v1885 = vadd.f32 0.0, %v1884
        %1886 = vmatmul.f32.gmra.mxu0 %v855
        %v1887 = vpop.f32.mrf.mxu0
        %v1888 = vadd.f32 0.0, %v1887
        %1889 = vmatmul.f32.gmra.mxu0 %v857
        %v1890 = vpop.f32.mrf.mxu0
        %v1891 = vadd.f32 0.0, %v1890
        %1892 = vmatmul.f32.gmra.mxu0 %v859
        %v1893 = vpop.f32.mrf.mxu0
        %v1894 = vadd.f32 0.0, %v1893
        %1895 = vmatmul.f32.gmra.mxu0 %v861
        %v1896 = vpop.f32.mrf.mxu0
        %v1897 = vadd.f32 0.0, %v1896
        %1898 = vmatmul.f32.gmra.mxu0 %v863
        %v1899 = vpop.f32.mrf.mxu0
        %v1900 = vadd.f32 0.0, %v1899
        %1901 = vmatmul.f32.gmra.mxu0 %v865
        %v1902 = vpop.f32.mrf.mxu0
        %v1903 = vadd.f32 0.0, %v1902
        %1904 = vmatmul.f32.gmra.mxu0 %v867
        %v1905 = vpop.f32.mrf.mxu0
        %v1906 = vadd.f32 0.0, %v1905
        %1907 = vmatmul.f32.gmra.mxu0 %v869
        %v1908 = vpop.f32.mrf.mxu0
        %v1909 = vadd.f32 0.0, %v1908
        %1910 = vmatmul.f32.gmra.mxu0 %v871
        %v1911 = vpop.f32.mrf.mxu0
        %v1912 = vadd.f32 0.0, %v1911
        %1913 = vmatmul.f32.gmra.mxu0 %v873
        %v1914 = vpop.f32.mrf.mxu0
        %v1915 = vadd.f32 0.0, %v1914
        %1916 = vmatmul.f32.gmra.mxu0 %v875
        %v1917 = vpop.f32.mrf.mxu0
        %v1918 = vadd.f32 0.0, %v1917
        %1919 = vmatmul.f32.gmra.mxu0 %v877
        %v1920 = vpop.f32.mrf.mxu0
        %v1921 = vadd.f32 0.0, %v1920
        %1922 = vmatmul.f32.gmra.mxu0 %v879
        %v1923 = vpop.f32.mrf.mxu0
        %v1924 = vadd.f32 0.0, %v1923
        %1925 = vmatmul.f32.gmra.mxu0 %v881
        %v1926 = vpop.f32.mrf.mxu0
        %v1927 = vadd.f32 0.0, %v1926
        %1928 = vmatmul.f32.gmra.mxu0 %v883
        %v1929 = vpop.f32.mrf.mxu0
        %v1930 = vadd.f32 0.0, %v1929
        %1931 = vmatmul.f32.gmra.mxu0 %v885
        %v1932 = vpop.f32.mrf.mxu0
        %v1933 = vadd.f32 0.0, %v1932
        %1934 = vmatmul.f32.gmra.mxu0 %v887
        %v1935 = vpop.f32.mrf.mxu0
        %v1936 = vadd.f32 0.0, %v1935
        %1937 = vmatmul.f32.gmra.mxu0 %v889
        %v1938 = vpop.f32.mrf.mxu0
        %v1939 = vadd.f32 0.0, %v1938
        %1940 = vmatmul.f32.gmra.mxu0 %v891
        %v1941 = vpop.f32.mrf.mxu0
        %v1942 = vadd.f32 0.0, %v1941
        %1943 = vmatmul.f32.gmra.mxu0 %v1364
        %v1944 = vpop.f32.mrf.mxu0
        %v1945 = vadd.f32 0.0, %v1944
        %1946 = vmatmul.f32.gmra.mxu0 %v1366
        %v1947 = vpop.f32.mrf.mxu0
        %v1948 = vadd.f32 0.0, %v1947
        %1949 = vmatmul.f32.gmra.mxu0 %v1839
        %v1950 = vpop.f32.mrf.mxu0
        %v1951 = vadd.f32 0.0, %v1950
        %1952 = vmatmul.f32.gmra.mxu0 %v1841
        %v1953 = vpop.f32.mrf.mxu0
        %v1954 = vadd.f32 0.0, %v1953
        %1955 = vdwg.mxu0
        %v1956 = vadd.f32 %v1797, %v1861
        %v1957 = vadd.f32 %v1798, %v1864
        %v1958 = vadd.f32 %v1799, %v1867
        %v1959 = vadd.f32 %v1800, %v1870
        %v1960 = vadd.f32 %v1801, %v1873
        %v1961 = vadd.f32 %v1802, %v1876
        %v1962 = vadd.f32 %v1803, %v1879
        %v1963 = vadd.f32 %v1804, %v1882
        %v1964 = vadd.f32 %v1805, %v1885
        %v1965 = vadd.f32 %v1806, %v1888
        %v1966 = vadd.f32 %v1807, %v1891
        %v1967 = vadd.f32 %v1808, %v1894
        %v1968 = vadd.f32 %v1809, %v1897
        %v1969 = vadd.f32 %v1810, %v1900
        %v1970 = vadd.f32 %v1811, %v1903
        %v1971 = vadd.f32 %v1812, %v1906
        %v1972 = vadd.f32 %v1813, %v1909
        %v1973 = vadd.f32 %v1814, %v1912
        %v1974 = vadd.f32 %v1815, %v1915
        %v1975 = vadd.f32 %v1816, %v1918
        %v1976 = vadd.f32 %v1817, %v1921
        %v1977 = vadd.f32 %v1818, %v1924
        %v1978 = vadd.f32 %v1819, %v1927
        %v1979 = vadd.f32 %v1820, %v1930
        %v1980 = vadd.f32 %v1821, %v1933
        %v1981 = vadd.f32 %v1822, %v1936
        %v1982 = vadd.f32 %v1823, %v1939
        %v1983 = vadd.f32 %v1824, %v1942
        %v1984 = vadd.f32 %v1825, %v1945
        %v1985 = vadd.f32 %v1826, %v1948
        %v1986 = vadd.f32 %v1827, %v1951
        %v1987 = vadd.f32 %v1828, %v1954
        %v1988 = vld [vmem:[%s2] sm:$0x1]
        %v1990 = vperm.slane %v1988, 0
        %v1992 = vmul.f32 %v1956, %v1990
        %v1993 = vmul.f32 %v1957, %v1990
        %v1994 = vmul.f32 %v1958, %v1990
        %v1995 = vmul.f32 %v1959, %v1990
        %v1996 = vmul.f32 %v1960, %v1990
        %v1997 = vmul.f32 %v1961, %v1990
        %v1998 = vmul.f32 %v1962, %v1990
        %v1999 = vmul.f32 %v1963, %v1990
        %v2000 = vmul.f32 %v1964, %v1990
        %v2001 = vmul.f32 %v1965, %v1990
        %v2002 = vmul.f32 %v1966, %v1990
        %v2003 = vmul.f32 %v1967, %v1990
        %v2004 = vmul.f32 %v1968, %v1990
        %v2005 = vmul.f32 %v1969, %v1990
        %v2006 = vmul.f32 %v1970, %v1990
        %v2007 = vmul.f32 %v1971, %v1990
        %v2008 = vmul.f32 %v1972, %v1990
        %v2009 = vmul.f32 %v1973, %v1990
        %v2010 = vmul.f32 %v1974, %v1990
        %v2011 = vmul.f32 %v1975, %v1990
        %v2012 = vmul.f32 %v1976, %v1990
        %v2013 = vmul.f32 %v1977, %v1990
        %v2014 = vmul.f32 %v1978, %v1990
        %v2015 = vmul.f32 %v1979, %v1990
        %v2016 = vmul.f32 %v1980, %v1990
        %v2017 = vmul.f32 %v1981, %v1990
        %v2018 = vmul.f32 %v1982, %v1990
        %v2019 = vmul.f32 %v1983, %v1990
        %v2020 = vmul.f32 %v1984, %v1990
        %v2021 = vmul.f32 %v1985, %v1990
        %v2022 = vmul.f32 %v1986, %v1990
        %v2023 = vmul.f32 %v1987, %v1990
        %v2024 = vld [vmem:[%s3] sm:$0x1]
        %v2026 = vperm.slane %v2024, 0
        %v2028 = vadd.f32 %v1992, %v2026
        %v2029 = vadd.f32 %v1993, %v2026
        %v2030 = vadd.f32 %v1994, %v2026
        %v2031 = vadd.f32 %v1995, %v2026
        %v2032 = vadd.f32 %v1996, %v2026
        %v2033 = vadd.f32 %v1997, %v2026
        %v2034 = vadd.f32 %v1998, %v2026
        %v2035 = vadd.f32 %v1999, %v2026
        %v2036 = vadd.f32 %v2000, %v2026
        %v2037 = vadd.f32 %v2001, %v2026
        %v2038 = vadd.f32 %v2002, %v2026
        %v2039 = vadd.f32 %v2003, %v2026
        %v2040 = vadd.f32 %v2004, %v2026
        %v2041 = vadd.f32 %v2005, %v2026
        %v2042 = vadd.f32 %v2006, %v2026
        %v2043 = vadd.f32 %v2007, %v2026
        %v2044 = vadd.f32 %v2008, %v2026
        %v2045 = vadd.f32 %v2009, %v2026
        %v2046 = vadd.f32 %v2010, %v2026
        %v2047 = vadd.f32 %v2011, %v2026
        %v2048 = vadd.f32 %v2012, %v2026
        %v2049 = vadd.f32 %v2013, %v2026
        %v2050 = vadd.f32 %v2014, %v2026
        %v2051 = vadd.f32 %v2015, %v2026
        %v2052 = vadd.f32 %v2016, %v2026
        %v2053 = vadd.f32 %v2017, %v2026
        %v2054 = vadd.f32 %v2018, %v2026
        %v2055 = vadd.f32 %v2019, %v2026
        %v2056 = vadd.f32 %v2020, %v2026
        %v2057 = vadd.f32 %v2021, %v2026
        %v2058 = vadd.f32 %v2022, %v2026
        %v2059 = vadd.f32 %v2023, %v2026
        %v2060 = vmax.f32 %v2028, 0.0
        %v2061 = vmax.f32 %v2029, 0.0
        %v2062 = vmax.f32 %v2030, 0.0
        %v2063 = vmax.f32 %v2031, 0.0
        %v2064 = vmax.f32 %v2032, 0.0
        %v2065 = vmax.f32 %v2033, 0.0
        %v2066 = vmax.f32 %v2034, 0.0
        %v2067 = vmax.f32 %v2035, 0.0
        %v2068 = vmax.f32 %v2036, 0.0
        %v2069 = vmax.f32 %v2037, 0.0
        %v2070 = vmax.f32 %v2038, 0.0
        %v2071 = vmax.f32 %v2039, 0.0
        %v2072 = vmax.f32 %v2040, 0.0
        %v2073 = vmax.f32 %v2041, 0.0
        %v2074 = vmax.f32 %v2042, 0.0
        %v2075 = vmax.f32 %v2043, 0.0
        %v2076 = vmax.f32 %v2044, 0.0
        %v2077 = vmax.f32 %v2045, 0.0
        %v2078 = vmax.f32 %v2046, 0.0
        %v2079 = vmax.f32 %v2047, 0.0
        %v2080 = vmax.f32 %v2048, 0.0
        %v2081 = vmax.f32 %v2049, 0.0
        %v2082 = vmax.f32 %v2050, 0.0
        %v2083 = vmax.f32 %v2051, 0.0
        %v2084 = vmax.f32 %v2052, 0.0
        %v2085 = vmax.f32 %v2053, 0.0
        %v2086 = vmax.f32 %v2054, 0.0
        %v2087 = vmax.f32 %v2055, 0.0
        %v2088 = vmax.f32 %v2056, 0.0
        %v2089 = vmax.f32 %v2057, 0.0
        %v2090 = vmax.f32 %v2058, 0.0
        %v2091 = vmax.f32 %v2059, 0.0
        %2092 = vst [vmem:[%s190] sm:$0xff] %v2060
        %2093 = vst [vmem:[%s190 + $0x8] sm:$0xff] %v2061
        %2094 = vst [vmem:[%s190 + $0x10] sm:$0xff] %v2062
        %2095 = vst [vmem:[%s190 + $0x18] sm:$0xff] %v2063
        %2096 = vst [vmem:[%s190 + $0x20] sm:$0xff] %v2064
        %2097 = vst [vmem:[%s190 + $0x28] sm:$0xff] %v2065
        %2098 = vst [vmem:[%s190 + $0x30] sm:$0xff] %v2066
        %2099 = vst [vmem:[%s190 + $0x38] sm:$0xff] %v2067
        %2100 = vst [vmem:[%s190 + $0x40] sm:$0xff] %v2068
        %2101 = vst [vmem:[%s190 + $0x48] sm:$0xff] %v2069
        %2102 = vst [vmem:[%s190 + $0x50] sm:$0xff] %v2070
        %2103 = vst [vmem:[%s190 + $0x58] sm:$0xff] %v2071
        %2104 = vst [vmem:[%s190 + $0x60] sm:$0xff] %v2072
        %2105 = vst [vmem:[%s190 + $0x68] sm:$0xff] %v2073
        %2106 = vst [vmem:[%s190 + $0x70] sm:$0xff] %v2074
        %2107 = vst [vmem:[%s190 + $0x78] sm:$0xff] %v2075
        %2108 = vst [vmem:[%s190 + $0x80] sm:$0xff] %v2076
        %2109 = vst [vmem:[%s190 + $0x88] sm:$0xff] %v2077
        %2110 = vst [vmem:[%s190 + $0x90] sm:$0xff] %v2078
        %2111 = vst [vmem:[%s190 + $0x98] sm:$0xff] %v2079
        %2112 = vst [vmem:[%s190 + $0xa0] sm:$0xff] %v2080
        %2113 = vst [vmem:[%s190 + $0xa8] sm:$0xff] %v2081
        %2114 = vst [vmem:[%s190 + $0xb0] sm:$0xff] %v2082
        %2115 = vst [vmem:[%s190 + $0xb8] sm:$0xff] %v2083
        %2116 = vst [vmem:[%s190 + $0xc0] sm:$0xff] %v2084
        %2117 = vst [vmem:[%s190 + $0xc8] sm:$0xff] %v2085
        %2118 = vst [vmem:[%s190 + $0xd0] sm:$0xff] %v2086
        %2119 = vst [vmem:[%s190 + $0xd8] sm:$0xff] %v2087
        %2120 = vst [vmem:[%s190 + $0xe0] sm:$0xff] %v2088
        %2121 = vst [vmem:[%s190 + $0xe8] sm:$0xff] %v2089
        %2122 = vst [vmem:[%s190 + $0xf0] sm:$0xff] %v2090
        %2123 = vst [vmem:[%s190 + $0xf8] sm:$0xff] %v2091
        %s2124 = sand.u32 %s115, 1
        %s2125 = scalar_lea.sflag [#allocation3], %s2124
        %s2126 = sand.u32 %s115, 1
        %s2127 = smul.addr %s2126, 256
        %s2128 = scalar_lea.vmem [#allocation2], %s2127
        // Predicated region
        $region37: #{tpu_custom_call.1} parent=35 // pred_check
          %p2129 = pneg %p125
        $region38: #{tpu_custom_call.1} parent=35 // pred_check_branch
          %2131 = sbr.rel (%p2129) target = $region40
        $region39: #{tpu_custom_call.1} parent=35 // pred_region
          %2133 = vsyncadd %s2125, 0
          %s2134 = smul.addr %s18, 32
          %s2135 = smul.addr %s2134, 8
          %s2136 = scalar_lea.hbm %s4, %s2135
          %s2137 = sshll.u32 %s2128, 4
          %s2138 = int_to_ptr.vmem [resolvable:$true] %s2137
          %s2139 = sshll.u32 %s2136, 4
          %s2140 = int_to_ptr.hbm [resolvable:$true] %s2139
          %2145 = dma.vmem_to_hbm [thread:$0]  %s2138, 4096, %s2140, %s2125, 128, 128, 8
        $region40: #{tpu_custom_call.1} parent=35 // pred_fallthru
          _
      $region36: #{tpu_custom_call.1} parent=5 // pred_fallthru
        _
      %p2146 = scmp.le.s32.totalorder 2, %s13
      // Predicated region
      $region41: #{tpu_custom_call.1} parent=5 // pred_check
        %p2147 = pneg %p2146
      $region42: #{tpu_custom_call.1} parent=5 // pred_check_branch
        %2149 = sbr.rel (%p2147) target = $region44
      $region43: #{tpu_custom_call.1} parent=5 // pred_region
        %s2150 = ssub.s32 %s13, 2
        // Predicated region
        $region45: #{tpu_custom_call.1} parent=43 // pred_check
          %p2151 = pneg %p131
        $region46: #{tpu_custom_call.1} parent=43 // pred_check_branch
          %2153 = sbr.rel (%p2151) target = $region48
        $region47: #{tpu_custom_call.1} parent=43 // pred_region
          %s2154 = sand.u32 %s116, 1
          %s2155 = scalar_lea.sflag [#allocation3], %s2154
          %s2156 = sand.u32 %s116, 1
          %s2157 = smul.addr %s2156, 256
          %s2158 = scalar_lea.vmem [#allocation2], %s2157
          %2160 = dma.done %s2155, 4096
        $region48: #{tpu_custom_call.1} parent=43 // pred_fallthru
          _
      $region44: #{tpu_custom_call.1} parent=5 // pred_fallthru
        _
    $region6: #{tpu_custom_call.1} parent=1 // loop_footer
      %s17 = sadd.s32 1, %s13
    $region7: #{tpu_custom_call.1} parent=1 // loop_footer_branch
      %12 = sbr.rel target = $region3
    $region8: #{tpu_custom_call.1} parent=1 // loop_exit
      _
    %2161 = vsyncpa [#allocation3], 1
    %s2162 = scalar_lea.sflag [#allocation3], 1
    %2163 = vsyncpa %s2162, 1

</llo_original>
